<compile_context>
chip_gen: v5e
topology: v5e:2x2
jax: 0.10.0
libtpu: 0.0.40
codegen_flags: <defaults>
</compile_context>

<pallas_src>
import functools

import numpy as np
import jax
import jax.numpy as jnp
from jax import lax
from jax.experimental import pallas as pl
from jax.experimental.pallas import tpu as pltpu


# ----------------------------------------------------------------------------
# Host-side construction of kernel-ready weights (pure layout bookkeeping).
# ----------------------------------------------------------------------------
def _conv_row_weight(w_pt, width):
    """w_pt: (Cout, Cin, 3, 3) -> T: (3, width*Cin, width*Cout) bf16.

    T[ky] maps one input row (position-major / channel-minor) to one conv output
    row whose columns are pool-parity ordered:
      column = P*(width//2)*Cout + j*Cout + co,  output position = 2*j + P.
    Entries whose horizontal tap would read outside [0, width) are zero (= padding).
    """
    cout, cin = w_pt.shape[0], w_pt.shape[1]
    half = width // 2
    sel = np.zeros((3, width, width), np.float32)       # (kx, w_in, out_index)
    for o in range(width):
        p, j = divmod(o, half)
        w_out = 2 * j + p
        for kx in range(3):
            w_in = w_out + kx - 1
            if 0 <= w_in < width:
                sel[kx, w_in, o] = 1.0
    t = jnp.einsum('xio,cnyx->yinoc', sel, w_pt)         # (3, W, Cin, W, Cout)
    return t.reshape(3, width * cin, width * cout).astype(jnp.bfloat16)


def _deconv_row_weight(w_pt, width):
    """w_pt: (Cin, Cout, 2, 2) -> D: (width*Cin, 2*2*width*Cout) bf16.

    One input row (width positions) -> two output rows (dy = 0, 1), each 2*width
    positions; columns ordered (dy, out position, Cout).
    """
    cin, cout = w_pt.shape[0], w_pt.shape[1]
    sel = np.zeros((width, 2 * width, 2), np.float32)    # (w_in, out_pos, dx)
    for w in range(width):
        for dx in range(2):
            sel[w, 2 * w + dx, dx] = 1.0
    d = jnp.einsum('wpd,ncyd->wnypc', sel, w_pt)         # (W, Cin, 2, 2W, Cout)
    return d.reshape(width * cin, 4 * width * cout).astype(jnp.bfloat16)


# ----------------------------------------------------------------------------
# Fused kernel: one image per grid step, everything stays in VMEM / vregs.
# ----------------------------------------------------------------------------
def _autoencoder_kernel(x_ref, t1_ref, t2_ref, d1_ref, d2_ref,
                        b1_ref, b2_ref, b3_ref, b4_ref, o_ref,
                        *, H, W, C1, C2, C3, C4):
    f32 = jnp.float32
    bf16 = jnp.bfloat16
    Hq = H // 4                     # rows per residue / per parity slab
    W2, W4 = W // 2, W // 4

    # -------- Layer 1: Conv2d(Cin->C1, 3x3, pad 1) + ReLU + MaxPool(2,2).
    # x_ref[0, c] holds rows {c, c+4, c+8, ...} of the vertically padded image.
    xs = [x_ref[0, c] for c in range(4)]                  # each (Hq+1, W*Cin) bf16
    t1 = [t1_ref[k] for k in range(3)]                    # each (W*Cin, W*C1)

    def conv1_rows(r):              # conv-output rows r, r+4, r+8, ... (no bias)
        acc = None
        for ky in range(3):
            c, q = (r + ky) % 4, (r + ky) // 4
            part = jnp.dot(xs[c][q:q + Hq], t1[ky], preferred_element_type=f32)
            acc = part if acc is None else acc + part
        return acc                                        # (Hq, W*C1)

    b1 = b1_ref[...]

    def pool_relu1(a, b):           # max over row pair + column parity, bias, relu
        m = jnp.maximum(a, b)
        m = jnp.maximum(m[:, :W2 * C1], m[:, W2 * C1:])
        return jnp.maximum(m + b1, 0.0).astype(bf16)      # (Hq, W2*C1)

    a1_even = pool_relu1(conv1_rows(0), conv1_rows(1))    # pooled rows 0,2,4,...
    a1_odd = pool_relu1(conv1_rows(2), conv1_rows(3))     # pooled rows 1,3,5,...

    # -------- Layer 2: Conv2d(C1->C2, 3x3, pad 1) + ReLU + MaxPool(2,2).
    zrow = jnp.zeros((1, W2 * C1), bf16)
    ev = jnp.concatenate([zrow, a1_odd], axis=0)          # padded rows 0,2,.. (Hq+1)
    od = jnp.concatenate([a1_even, zrow], axis=0)         # padded rows 1,3,.. (Hq+1)
    t2 = [t2_ref[k] for k in range(3)]
    y_e = (jnp.dot(ev[0:Hq], t2[0], preferred_element_type=f32)
           + jnp.dot(od[0:Hq], t2[1], preferred_element_type=f32)
           + jnp.dot(ev[1:Hq + 1], t2[2], preferred_element_type=f32))
    y_o = (jnp.dot(od[0:Hq], t2[0], preferred_element_type=f32)
           + jnp.dot(ev[1:Hq + 1], t2[1], preferred_element_type=f32)
           + jnp.dot(od[1:Hq + 1], t2[2], preferred_element_type=f32))
    m2 = jnp.maximum(jnp.maximum(y_e[:, :W4 * C2], y_e[:, W4 * C2:]),
                     jnp.maximum(y_o[:, :W4 * C2], y_o[:, W4 * C2:]))
    a2 = jnp.maximum(m2 + b2_ref[...], 0.0).astype(bf16)  # (Hq, W4*C2)

    # -------- Layer 3: ConvTranspose2d(C2->C3, 2, stride 2) + ReLU.
    y3 = jnp.dot(a2, d1_ref[...], preferred_element_type=f32) + b3_ref[...]
    y3 = jnp.maximum(y3, 0.0)                              # (Hq, 2*W2*C3)
    a3_e = y3[:, :W2 * C3].astype(bf16)                    # 8x8 map rows 0,2,4,...
    a3_o = y3[:, W2 * C3:].astype(bf16)                    # rows 1,3,5,...

    # -------- Layer 4: ConvTranspose2d(C3->C4, 2, stride 2) + Sigmoid.
    d2 = d2_ref[...]
    b4 = b4_ref[...]

    def deconv_sigmoid(a):
        y = jnp.dot(a, d2, preferred_element_type=f32) + b4
        return 1.0 / (1.0 + jnp.exp(-y))                   # exact sigmoid, f32

    o_ref[0, 0:Hq, :] = deconv_sigmoid(a3_e)               # final rows 4k + {0,1}
    o_ref[0, Hq:2 * Hq, :] = deconv_sigmoid(a3_o)          # final rows 4k + {2,3}


# ----------------------------------------------------------------------------
# Wrapper: layout glue (tiny, XLA-side) + the single pallas_call.
# ----------------------------------------------------------------------------
def conv_autoencoder_pallas(x_nchw, params):
    N, Cin, H, W = x_nchw.shape
    assert H % 4 == 0 and W % 4 == 0, "spatial dims must be divisible by 4"
    C1 = params["w1"].shape[0]
    C2 = params["w2"].shape[0]
    C3 = params["wt1"].shape[1]
    C4 = params["wt2"].shape[1]
    H2, W2, W4 = H // 2, W // 2, W // 4
    rows_per = H // 4 + 1

    # Input: NCHW -> per-row layout, vertical zero pad, rows split by (row % 4).
    x = jnp.transpose(x_nchw, (0, 2, 3, 1)).astype(jnp.bfloat16)   # cast early
    x = x.reshape(N, H, W * Cin)
    x = jnp.pad(x, ((0, 0), (1, 4 * rows_per - (H + 1)), (0, 0)))
    xres = x.reshape(N, rows_per, 4, W * Cin).transpose(0, 2, 1, 3)  # (N,4,rows,W*Cin)

    # Kernel-ready weights / biases (tiny one-off einsums).
    t1 = _conv_row_weight(params["w1"], W)                 # (3, W*Cin,  W*C1)
    t2 = _conv_row_weight(params["w2"], W2)                # (3, W2*C1, W2*C2)
    d1 = _deconv_row_weight(params["wt1"], W4)             # (W4*C2, 2*W2*C3)
    d2 = _deconv_row_weight(params["wt2"], W2)             # (W2*C3, 2*W*C4)
    b1 = jnp.tile(params["b1"], W2).reshape(1, W2 * C1).astype(jnp.float32)
    b2 = jnp.tile(params["b2"], W4).reshape(1, W4 * C2).astype(jnp.float32)
    b3 = jnp.tile(params["bt1"], 2 * W2).reshape(1, 2 * W2 * C3).astype(jnp.float32)
    b4 = jnp.tile(params["bt2"], 2 * W).reshape(1, 2 * W * C4).astype(jnp.float32)

    kernel = functools.partial(_autoencoder_kernel, H=H, W=W,
                               C1=C1, C2=C2, C3=C3, C4=C4)
    out = pl.pallas_call(
        kernel,
        out_shape=jax.ShapeDtypeStruct((N, H2, 2 * W * C4), jnp.float32),
        grid_spec=pltpu.PrefetchScalarGridSpec(
            num_scalar_prefetch=0,
            grid=(N,),
            in_specs=[
                pl.BlockSpec((1, 4, rows_per, W * Cin), lambda n: (n, 0, 0, 0)),
                pl.BlockSpec((3, W * Cin, W * C1), lambda n: (0, 0, 0)),   # resident
                pl.BlockSpec((3, W2 * C1, W2 * C2), lambda n: (0, 0, 0)),  # resident
                pl.BlockSpec((W4 * C2, 2 * W2 * C3), lambda n: (0, 0)),    # resident
                pl.BlockSpec((W2 * C3, 2 * W * C4), lambda n: (0, 0)),     # resident
                pl.BlockSpec((1, W2 * C1), lambda n: (0, 0)),
                pl.BlockSpec((1, W4 * C2), lambda n: (0, 0)),
                pl.BlockSpec((1, 2 * W2 * C3), lambda n: (0, 0)),
                pl.BlockSpec((1, 2 * W * C4), lambda n: (0, 0)),
            ],
            out_specs=pl.BlockSpec((1, H2, 2 * W * C4), lambda n: (n, 0, 0)),
        ),
        compiler_params=pltpu.CompilerParams(
            dimension_semantics=("parallel",)),
    )(xres, t1, t2, d1, d2, b1, b2, b3, b4)

    # Decode: out rows [0:H/4) are final rows 4k+{0,1}; [H/4:H/2) are 4k+{2,3};
    # each 2*W*C4 column block is (dy, w, c).
    o = out.reshape(N, 2, H // 4, 2, W, C4)                # (N, s, k, dy, w, c)
    o = jnp.transpose(o, (0, 2, 1, 3, 4, 5)).reshape(N, H, W, C4)
    return jnp.transpose(o, (0, 3, 1, 2))                  # NHWC -> NCHW


@jax.jit
def conv_autoencoder_forward(x_nchw, params):
    return conv_autoencoder_pallas(x_nchw, params)


# ----------------------------------------------------------------------------
# Parameters (PyTorch-shaped) and a pure-JAX f32 reference for validation.
# ----------------------------------------------------------------------------
def make_params():
    key = jax.random.PRNGKey(0)
    ks = jax.random.split(key, 8)

    def uinit(k, shape, fan_in):
        bound = 1.0 / float(fan_in) ** 0.5
        return jax.random.uniform(k, shape, jnp.float32, -bound, bound)

    return dict(
        # Conv2d(3, 16, 3, padding=1)
        w1=uinit(ks[0], (16, 3, 3, 3), 3 * 9), b1=uinit(ks[1], (16,), 3 * 9),
        # Conv2d(16, 4, 3, padding=1)
        w2=uinit(ks[2], (4, 16, 3, 3), 16 * 9), b2=uinit(ks[3], (4,), 16 * 9),
        # ConvTranspose2d(4, 16, 2, stride=2)
        wt1=uinit(ks[4], (4, 16, 2, 2), 4 * 4), bt1=uinit(ks[5], (16,), 4 * 4),
        # ConvTranspose2d(16, 3, 2, stride=2)
        wt2=uinit(ks[6], (16, 3, 2, 2), 16 * 4), bt2=uinit(ks[7], (3,), 16 * 4),
    )


def _reference_forward(x, p):
    dn = ("NCHW", "OIHW", "NCHW")

    def conv(x, w, b):
        y = lax.conv_general_dilated(x, w, (1, 1), ((1, 1), (1, 1)),
                                     dimension_numbers=dn)
        return y + b[None, :, None, None]

    def pool(x):
        return lax.reduce_window(x, -jnp.inf, lax.max, (1, 1, 2, 2),
                                 (1, 1, 2, 2), "VALID")

    def deconv(x, w, b):      # kernel 2, stride 2 -> non-overlapping taps
        n, _, h, wd = x.shape
        o = w.shape[1]
        y = jnp.einsum('nihw,ioyd->nohywd', x, w).reshape(n, o, 2 * h, 2 * wd)
        return y + b[None, :, None, None]

    h = pool(jnp.maximum(conv(x, p["w1"], p["b1"]), 0.0))
    h = pool(jnp.maximum(conv(h, p["w2"], p["b2"]), 0.0))
    h = jnp.maximum(deconv(h, p["wt1"], p["bt1"]), 0.0)
    return jax.nn.sigmoid(deconv(h, p["wt2"], p["bt2"]))


if __name__ == "__main__":
    params = make_params()
    x = jax.random.uniform(jax.random.PRNGKey(0), (2, 3, 16, 16), jnp.float32)

    y = conv_autoencoder_forward(x, params)
    y = jax.block_until_ready(y)

    assert y.shape == (2, 3, 16, 16), y.shape
    assert bool(jnp.all(jnp.isfinite(y)))
    assert bool(jnp.all((y >= 0.0) & (y <= 1.0)))          # sigmoid output range

    ref = _reference_forward(x, params)
    err = float(jnp.max(jnp.abs(y - ref)))
    assert err < 3e-2, f"mismatch vs f32 reference: {err}"  # bf16 matmul tolerance

    print("KERNEL_OK")
</pallas_src>

<mosaic_0001>
module attributes {stable_mosaic.version = 11 : i64} {
  func.func @_autoencoder_kernel(%arg0: i32, %arg1: memref<1x4x5x48xbf16, #tpu.memory_space<vmem>>, %arg2: memref<3x48x256xbf16, #tpu.memory_space<vmem>>, %arg3: memref<3x128x32xbf16, #tpu.memory_space<vmem>>, %arg4: memref<16x256xbf16, #tpu.memory_space<vmem>>, %arg5: memref<128x96xbf16, #tpu.memory_space<vmem>>, %arg6: memref<1x128xf32, #tpu.memory_space<vmem>>, %arg7: memref<1x16xf32, #tpu.memory_space<vmem>>, %arg8: memref<1x256xf32, #tpu.memory_space<vmem>>, %arg9: memref<1x96xf32, #tpu.memory_space<vmem>>, %arg10: memref<1x8x96xf32, #tpu.memory_space<vmem>>) attributes {dimension_semantics = [#tpu.dimension_semantics<parallel>], iteration_bounds = array<i64: 2>, scalar_prefetch = 0 : i64, scratch_operands = 0 : i64, tpu.core_type = #tpu.core_type<tc>, window_params = [{transform_indices = @transform_0, window_bounds = array<i64: 1, 4, 5, 48>}, {pipeline_mode = #tpu.pipeline_mode<synchronous>, transform_indices = @transform_1, window_bounds = array<i64: 3, 48, 256>}, {pipeline_mode = #tpu.pipeline_mode<synchronous>, transform_indices = @transform_2, window_bounds = array<i64: 3, 128, 32>}, {pipeline_mode = #tpu.pipeline_mode<synchronous>, transform_indices = @transform_3, window_bounds = array<i64: 16, 256>}, {pipeline_mode = #tpu.pipeline_mode<synchronous>, transform_indices = @transform_4, window_bounds = array<i64: 128, 96>}, {pipeline_mode = #tpu.pipeline_mode<synchronous>, transform_indices = @transform_5, window_bounds = array<i64: 1, 128>}, {pipeline_mode = #tpu.pipeline_mode<synchronous>, transform_indices = @transform_6, window_bounds = array<i64: 1, 16>}, {pipeline_mode = #tpu.pipeline_mode<synchronous>, transform_indices = @transform_7, window_bounds = array<i64: 1, 256>}, {pipeline_mode = #tpu.pipeline_mode<synchronous>, transform_indices = @transform_8, window_bounds = array<i64: 1, 96>}, {transform_indices = @transform_9, window_bounds = array<i64: 1, 8, 96>}]} {
    %c0 = arith.constant 0 : index
    %c0_0 = arith.constant 0 : index
    %c0_1 = arith.constant 0 : index
    %c0_2 = arith.constant 0 : index
    %0 = vector.load %arg1[%c0, %c0_0, %c0_1, %c0_2] : memref<1x4x5x48xbf16, #tpu.memory_space<vmem>>, vector<1x1x5x48xbf16>
    %1 = vector.shape_cast %0 : vector<1x1x5x48xbf16> to vector<5x48xbf16>
    %c0_3 = arith.constant 0 : index
    %c1 = arith.constant 1 : index
    %c0_4 = arith.constant 0 : index
    %c0_5 = arith.constant 0 : index
    %2 = vector.load %arg1[%c0_3, %c1, %c0_4, %c0_5] : memref<1x4x5x48xbf16, #tpu.memory_space<vmem>>, vector<1x1x5x48xbf16>
    %3 = vector.shape_cast %2 : vector<1x1x5x48xbf16> to vector<5x48xbf16>
    %c0_6 = arith.constant 0 : index
    %c2 = arith.constant 2 : index
    %c0_7 = arith.constant 0 : index
    %c0_8 = arith.constant 0 : index
    %4 = vector.load %arg1[%c0_6, %c2, %c0_7, %c0_8] : memref<1x4x5x48xbf16, #tpu.memory_space<vmem>>, vector<1x1x5x48xbf16>
    %5 = vector.shape_cast %4 : vector<1x1x5x48xbf16> to vector<5x48xbf16>
    %c0_9 = arith.constant 0 : index
    %c3 = arith.constant 3 : index
    %c0_10 = arith.constant 0 : index
    %c0_11 = arith.constant 0 : index
    %6 = vector.load %arg1[%c0_9, %c3, %c0_10, %c0_11] : memref<1x4x5x48xbf16, #tpu.memory_space<vmem>>, vector<1x1x5x48xbf16>
    %7 = vector.shape_cast %6 : vector<1x1x5x48xbf16> to vector<5x48xbf16>
    %c0_12 = arith.constant 0 : index
    %c0_13 = arith.constant 0 : index
    %c0_14 = arith.constant 0 : index
    %8 = vector.load %arg2[%c0_12, %c0_13, %c0_14] : memref<3x48x256xbf16, #tpu.memory_space<vmem>>, vector<1x48x256xbf16>
    %9 = vector.shape_cast %8 : vector<1x48x256xbf16> to vector<48x256xbf16>
    %c1_15 = arith.constant 1 : index
    %c0_16 = arith.constant 0 : index
    %c0_17 = arith.constant 0 : index
    %10 = vector.load %arg2[%c1_15, %c0_16, %c0_17] : memref<3x48x256xbf16, #tpu.memory_space<vmem>>, vector<1x48x256xbf16>
    %11 = vector.shape_cast %10 : vector<1x48x256xbf16> to vector<48x256xbf16>
    %c2_18 = arith.constant 2 : index
    %c0_19 = arith.constant 0 : index
    %c0_20 = arith.constant 0 : index
    %12 = vector.load %arg2[%c2_18, %c0_19, %c0_20] : memref<3x48x256xbf16, #tpu.memory_space<vmem>>, vector<1x48x256xbf16>
    %13 = vector.shape_cast %12 : vector<1x48x256xbf16> to vector<48x256xbf16>
    %c0_21 = arith.constant 0 : index
    %c0_22 = arith.constant 0 : index
    %14 = vector.load %arg6[%c0_21, %c0_22] : memref<1x128xf32, #tpu.memory_space<vmem>>, vector<1x128xf32>
    %15 = vector.extract_strided_slice %1 {offsets = [0, 0], sizes = [4, 48], strides = [1, 1]} : vector<5x48xbf16> to vector<4x48xbf16>
    %cst = arith.constant dense<0.000000e+00> : vector<4x256xf32>
    %16 = tpu.matmul %15, %9, %cst {dimension_numbers = #tpu.dot_dimension_numbers<[1], [0], [0], [1], [0, 0, 1, 1], [], []>} : vector<4x48xbf16>, vector<48x256xbf16>, vector<4x256xf32> -> vector<4x256xf32>
    %17 = vector.extract_strided_slice %3 {offsets = [0, 0], sizes = [4, 48], strides = [1, 1]} : vector<5x48xbf16> to vector<4x48xbf16>
    %cst_23 = arith.constant dense<0.000000e+00> : vector<4x256xf32>
    %18 = tpu.matmul %17, %11, %cst_23 {dimension_numbers = #tpu.dot_dimension_numbers<[1], [0], [0], [1], [0, 0, 1, 1], [], []>} : vector<4x48xbf16>, vector<48x256xbf16>, vector<4x256xf32> -> vector<4x256xf32>
    %19 = arith.addf %16, %18 : vector<4x256xf32>
    %20 = vector.extract_strided_slice %5 {offsets = [0, 0], sizes = [4, 48], strides = [1, 1]} : vector<5x48xbf16> to vector<4x48xbf16>
    %cst_24 = arith.constant dense<0.000000e+00> : vector<4x256xf32>
    %21 = tpu.matmul %20, %13, %cst_24 {dimension_numbers = #tpu.dot_dimension_numbers<[1], [0], [0], [1], [0, 0, 1, 1], [], []>} : vector<4x48xbf16>, vector<48x256xbf16>, vector<4x256xf32> -> vector<4x256xf32>
    %22 = arith.addf %19, %21 : vector<4x256xf32>
    %23 = vector.extract_strided_slice %3 {offsets = [0, 0], sizes = [4, 48], strides = [1, 1]} : vector<5x48xbf16> to vector<4x48xbf16>
    %cst_25 = arith.constant dense<0.000000e+00> : vector<4x256xf32>
    %24 = tpu.matmul %23, %9, %cst_25 {dimension_numbers = #tpu.dot_dimension_numbers<[1], [0], [0], [1], [0, 0, 1, 1], [], []>} : vector<4x48xbf16>, vector<48x256xbf16>, vector<4x256xf32> -> vector<4x256xf32>
    %25 = vector.extract_strided_slice %5 {offsets = [0, 0], sizes = [4, 48], strides = [1, 1]} : vector<5x48xbf16> to vector<4x48xbf16>
    %cst_26 = arith.constant dense<0.000000e+00> : vector<4x256xf32>
    %26 = tpu.matmul %25, %11, %cst_26 {dimension_numbers = #tpu.dot_dimension_numbers<[1], [0], [0], [1], [0, 0, 1, 1], [], []>} : vector<4x48xbf16>, vector<48x256xbf16>, vector<4x256xf32> -> vector<4x256xf32>
    %27 = arith.addf %24, %26 : vector<4x256xf32>
    %28 = vector.extract_strided_slice %7 {offsets = [0, 0], sizes = [4, 48], strides = [1, 1]} : vector<5x48xbf16> to vector<4x48xbf16>
    %cst_27 = arith.constant dense<0.000000e+00> : vector<4x256xf32>
    %29 = tpu.matmul %28, %13, %cst_27 {dimension_numbers = #tpu.dot_dimension_numbers<[1], [0], [0], [1], [0, 0, 1, 1], [], []>} : vector<4x48xbf16>, vector<48x256xbf16>, vector<4x256xf32> -> vector<4x256xf32>
    %30 = arith.addf %27, %29 : vector<4x256xf32>
    %31 = arith.maximumf %22, %30 : vector<4x256xf32>
    %32 = vector.extract_strided_slice %31 {offsets = [0, 0], sizes = [4, 128], strides = [1, 1]} : vector<4x256xf32> to vector<4x128xf32>
    %33 = vector.extract_strided_slice %31 {offsets = [0, 128], sizes = [4, 128], strides = [1, 1]} : vector<4x256xf32> to vector<4x128xf32>
    %34 = arith.maximumf %32, %33 : vector<4x128xf32>
    %35 = vector.broadcast %14 : vector<1x128xf32> to vector<4x128xf32>
    %36 = arith.addf %34, %35 : vector<4x128xf32>
    %cst_28 = arith.constant 0.000000e+00 : f32
    %37 = vector.broadcast %cst_28 : f32 to vector<4x128xf32>
    %38 = arith.maximumf %36, %37 : vector<4x128xf32>
    %39 = arith.truncf %38 : vector<4x128xf32> to vector<4x128xbf16>
    %40 = vector.extract_strided_slice %5 {offsets = [0, 0], sizes = [4, 48], strides = [1, 1]} : vector<5x48xbf16> to vector<4x48xbf16>
    %cst_29 = arith.constant dense<0.000000e+00> : vector<4x256xf32>
    %41 = tpu.matmul %40, %9, %cst_29 {dimension_numbers = #tpu.dot_dimension_numbers<[1], [0], [0], [1], [0, 0, 1, 1], [], []>} : vector<4x48xbf16>, vector<48x256xbf16>, vector<4x256xf32> -> vector<4x256xf32>
    %42 = vector.extract_strided_slice %7 {offsets = [0, 0], sizes = [4, 48], strides = [1, 1]} : vector<5x48xbf16> to vector<4x48xbf16>
    %cst_30 = arith.constant dense<0.000000e+00> : vector<4x256xf32>
    %43 = tpu.matmul %42, %11, %cst_30 {dimension_numbers = #tpu.dot_dimension_numbers<[1], [0], [0], [1], [0, 0, 1, 1], [], []>} : vector<4x48xbf16>, vector<48x256xbf16>, vector<4x256xf32> -> vector<4x256xf32>
    %44 = arith.addf %41, %43 : vector<4x256xf32>
    %45 = vector.extract_strided_slice %1 {offsets = [1, 0], sizes = [4, 48], strides = [1, 1]} : vector<5x48xbf16> to vector<4x48xbf16>
    %cst_31 = arith.constant dense<0.000000e+00> : vector<4x256xf32>
    %46 = tpu.matmul %45, %13, %cst_31 {dimension_numbers = #tpu.dot_dimension_numbers<[1], [0], [0], [1], [0, 0, 1, 1], [], []>} : vector<4x48xbf16>, vector<48x256xbf16>, vector<4x256xf32> -> vector<4x256xf32>
    %47 = arith.addf %44, %46 : vector<4x256xf32>
    %48 = vector.extract_strided_slice %7 {offsets = [0, 0], sizes = [4, 48], strides = [1, 1]} : vector<5x48xbf16> to vector<4x48xbf16>
    %cst_32 = arith.constant dense<0.000000e+00> : vector<4x256xf32>
    %49 = tpu.matmul %48, %9, %cst_32 {dimension_numbers = #tpu.dot_dimension_numbers<[1], [0], [0], [1], [0, 0, 1, 1], [], []>} : vector<4x48xbf16>, vector<48x256xbf16>, vector<4x256xf32> -> vector<4x256xf32>
    %50 = vector.extract_strided_slice %1 {offsets = [1, 0], sizes = [4, 48], strides = [1, 1]} : vector<5x48xbf16> to vector<4x48xbf16>
    %cst_33 = arith.constant dense<0.000000e+00> : vector<4x256xf32>
    %51 = tpu.matmul %50, %11, %cst_33 {dimension_numbers = #tpu.dot_dimension_numbers<[1], [0], [0], [1], [0, 0, 1, 1], [], []>} : vector<4x48xbf16>, vector<48x256xbf16>, vector<4x256xf32> -> vector<4x256xf32>
    %52 = arith.addf %49, %51 : vector<4x256xf32>
    %53 = vector.extract_strided_slice %3 {offsets = [1, 0], sizes = [4, 48], strides = [1, 1]} : vector<5x48xbf16> to vector<4x48xbf16>
    %cst_34 = arith.constant dense<0.000000e+00> : vector<4x256xf32>
    %54 = tpu.matmul %53, %13, %cst_34 {dimension_numbers = #tpu.dot_dimension_numbers<[1], [0], [0], [1], [0, 0, 1, 1], [], []>} : vector<4x48xbf16>, vector<48x256xbf16>, vector<4x256xf32> -> vector<4x256xf32>
    %55 = arith.addf %52, %54 : vector<4x256xf32>
    %56 = arith.maximumf %47, %55 : vector<4x256xf32>
    %57 = vector.extract_strided_slice %56 {offsets = [0, 0], sizes = [4, 128], strides = [1, 1]} : vector<4x256xf32> to vector<4x128xf32>
    %58 = vector.extract_strided_slice %56 {offsets = [0, 128], sizes = [4, 128], strides = [1, 1]} : vector<4x256xf32> to vector<4x128xf32>
    %59 = arith.maximumf %57, %58 : vector<4x128xf32>
    %60 = vector.broadcast %14 : vector<1x128xf32> to vector<4x128xf32>
    %61 = arith.addf %59, %60 : vector<4x128xf32>
    %cst_35 = arith.constant 0.000000e+00 : f32
    %62 = vector.broadcast %cst_35 : f32 to vector<4x128xf32>
    %63 = arith.maximumf %61, %62 : vector<4x128xf32>
    %64 = arith.truncf %63 : vector<4x128xf32> to vector<4x128xbf16>
    %cst_36 = arith.constant 0.000000e+00 : bf16
    %65 = vector.broadcast %cst_36 : bf16 to vector<1x128xbf16>
    %66 = tpu.concatenate %65, %64 in 0 : vector<1x128xbf16>, vector<4x128xbf16> -> vector<5x128xbf16>
    %67 = tpu.concatenate %39, %65 in 0 : vector<4x128xbf16>, vector<1x128xbf16> -> vector<5x128xbf16>
    %c0_37 = arith.constant 0 : index
    %c0_38 = arith.constant 0 : index
    %c0_39 = arith.constant 0 : index
    %68 = vector.load %arg3[%c0_37, %c0_38, %c0_39] : memref<3x128x32xbf16, #tpu.memory_space<vmem>>, vector<1x128x32xbf16>
    %69 = vector.shape_cast %68 : vector<1x128x32xbf16> to vector<128x32xbf16>
    %c1_40 = arith.constant 1 : index
    %c0_41 = arith.constant 0 : index
    %c0_42 = arith.constant 0 : index
    %70 = vector.load %arg3[%c1_40, %c0_41, %c0_42] : memref<3x128x32xbf16, #tpu.memory_space<vmem>>, vector<1x128x32xbf16>
    %71 = vector.shape_cast %70 : vector<1x128x32xbf16> to vector<128x32xbf16>
    %c2_43 = arith.constant 2 : index
    %c0_44 = arith.constant 0 : index
    %c0_45 = arith.constant 0 : index
    %72 = vector.load %arg3[%c2_43, %c0_44, %c0_45] : memref<3x128x32xbf16, #tpu.memory_space<vmem>>, vector<1x128x32xbf16>
    %73 = vector.shape_cast %72 : vector<1x128x32xbf16> to vector<128x32xbf16>
    %74 = vector.extract_strided_slice %66 {offsets = [0, 0], sizes = [4, 128], strides = [1, 1]} : vector<5x128xbf16> to vector<4x128xbf16>
    %cst_46 = arith.constant dense<0.000000e+00> : vector<4x32xf32>
    %75 = tpu.matmul %74, %69, %cst_46 {dimension_numbers = #tpu.dot_dimension_numbers<[1], [0], [0], [1], [0, 0, 1, 1], [], []>} : vector<4x128xbf16>, vector<128x32xbf16>, vector<4x32xf32> -> vector<4x32xf32>
    %76 = vector.extract_strided_slice %67 {offsets = [0, 0], sizes = [4, 128], strides = [1, 1]} : vector<5x128xbf16> to vector<4x128xbf16>
    %cst_47 = arith.constant dense<0.000000e+00> : vector<4x32xf32>
    %77 = tpu.matmul %76, %71, %cst_47 {dimension_numbers = #tpu.dot_dimension_numbers<[1], [0], [0], [1], [0, 0, 1, 1], [], []>} : vector<4x128xbf16>, vector<128x32xbf16>, vector<4x32xf32> -> vector<4x32xf32>
    %78 = arith.addf %75, %77 : vector<4x32xf32>
    %79 = vector.extract_strided_slice %66 {offsets = [1, 0], sizes = [4, 128], strides = [1, 1]} : vector<5x128xbf16> to vector<4x128xbf16>
    %cst_48 = arith.constant dense<0.000000e+00> : vector<4x32xf32>
    %80 = tpu.matmul %79, %73, %cst_48 {dimension_numbers = #tpu.dot_dimension_numbers<[1], [0], [0], [1], [0, 0, 1, 1], [], []>} : vector<4x128xbf16>, vector<128x32xbf16>, vector<4x32xf32> -> vector<4x32xf32>
    %81 = arith.addf %78, %80 : vector<4x32xf32>
    %82 = vector.extract_strided_slice %67 {offsets = [0, 0], sizes = [4, 128], strides = [1, 1]} : vector<5x128xbf16> to vector<4x128xbf16>
    %cst_49 = arith.constant dense<0.000000e+00> : vector<4x32xf32>
    %83 = tpu.matmul %82, %69, %cst_49 {dimension_numbers = #tpu.dot_dimension_numbers<[1], [0], [0], [1], [0, 0, 1, 1], [], []>} : vector<4x128xbf16>, vector<128x32xbf16>, vector<4x32xf32> -> vector<4x32xf32>
    %84 = vector.extract_strided_slice %66 {offsets = [1, 0], sizes = [4, 128], strides = [1, 1]} : vector<5x128xbf16> to vector<4x128xbf16>
    %cst_50 = arith.constant dense<0.000000e+00> : vector<4x32xf32>
    %85 = tpu.matmul %84, %71, %cst_50 {dimension_numbers = #tpu.dot_dimension_numbers<[1], [0], [0], [1], [0, 0, 1, 1], [], []>} : vector<4x128xbf16>, vector<128x32xbf16>, vector<4x32xf32> -> vector<4x32xf32>
    %86 = arith.addf %83, %85 : vector<4x32xf32>
    %87 = vector.extract_strided_slice %67 {offsets = [1, 0], sizes = [4, 128], strides = [1, 1]} : vector<5x128xbf16> to vector<4x128xbf16>
    %cst_51 = arith.constant dense<0.000000e+00> : vector<4x32xf32>
    %88 = tpu.matmul %87, %73, %cst_51 {dimension_numbers = #tpu.dot_dimension_numbers<[1], [0], [0], [1], [0, 0, 1, 1], [], []>} : vector<4x128xbf16>, vector<128x32xbf16>, vector<4x32xf32> -> vector<4x32xf32>
    %89 = arith.addf %86, %88 : vector<4x32xf32>
    %90 = vector.extract_strided_slice %81 {offsets = [0, 0], sizes = [4, 16], strides = [1, 1]} : vector<4x32xf32> to vector<4x16xf32>
    %91 = vector.extract_strided_slice %81 {offsets = [0, 16], sizes = [4, 16], strides = [1, 1]} : vector<4x32xf32> to vector<4x16xf32>
    %92 = arith.maximumf %90, %91 : vector<4x16xf32>
    %93 = vector.extract_strided_slice %89 {offsets = [0, 0], sizes = [4, 16], strides = [1, 1]} : vector<4x32xf32> to vector<4x16xf32>
    %94 = vector.extract_strided_slice %89 {offsets = [0, 16], sizes = [4, 16], strides = [1, 1]} : vector<4x32xf32> to vector<4x16xf32>
    %95 = arith.maximumf %93, %94 : vector<4x16xf32>
    %96 = arith.maximumf %92, %95 : vector<4x16xf32>
    %c0_52 = arith.constant 0 : index
    %c0_53 = arith.constant 0 : index
    %97 = vector.load %arg7[%c0_52, %c0_53] : memref<1x16xf32, #tpu.memory_space<vmem>>, vector<1x16xf32>
    %98 = vector.broadcast %97 : vector<1x16xf32> to vector<4x16xf32>
    %99 = arith.addf %96, %98 : vector<4x16xf32>
    %cst_54 = arith.constant 0.000000e+00 : f32
    %100 = vector.broadcast %cst_54 : f32 to vector<4x16xf32>
    %101 = arith.maximumf %99, %100 : vector<4x16xf32>
    %102 = arith.truncf %101 : vector<4x16xf32> to vector<4x16xbf16>
    %c0_55 = arith.constant 0 : index
    %c0_56 = arith.constant 0 : index
    %103 = vector.load %arg4[%c0_55, %c0_56] : memref<16x256xbf16, #tpu.memory_space<vmem>>, vector<16x256xbf16>
    %cst_57 = arith.constant dense<0.000000e+00> : vector<4x256xf32>
    %104 = tpu.matmul %102, %103, %cst_57 {dimension_numbers = #tpu.dot_dimension_numbers<[1], [0], [0], [1], [0, 0, 1, 1], [], []>} : vector<4x16xbf16>, vector<16x256xbf16>, vector<4x256xf32> -> vector<4x256xf32>
    %c0_58 = arith.constant 0 : index
    %c0_59 = arith.constant 0 : index
    %105 = vector.load %arg8[%c0_58, %c0_59] : memref<1x256xf32, #tpu.memory_space<vmem>>, vector<1x256xf32>
    %106 = vector.broadcast %105 : vector<1x256xf32> to vector<4x256xf32>
    %107 = arith.addf %104, %106 : vector<4x256xf32>
    %cst_60 = arith.constant 0.000000e+00 : f32
    %108 = vector.broadcast %cst_60 : f32 to vector<4x256xf32>
    %109 = arith.maximumf %107, %108 : vector<4x256xf32>
    %110 = vector.extract_strided_slice %109 {offsets = [0, 0], sizes = [4, 128], strides = [1, 1]} : vector<4x256xf32> to vector<4x128xf32>
    %111 = arith.truncf %110 : vector<4x128xf32> to vector<4x128xbf16>
    %112 = vector.extract_strided_slice %109 {offsets = [0, 128], sizes = [4, 128], strides = [1, 1]} : vector<4x256xf32> to vector<4x128xf32>
    %113 = arith.truncf %112 : vector<4x128xf32> to vector<4x128xbf16>
    %c0_61 = arith.constant 0 : index
    %c0_62 = arith.constant 0 : index
    %114 = vector.load %arg5[%c0_61, %c0_62] : memref<128x96xbf16, #tpu.memory_space<vmem>>, vector<128x96xbf16>
    %c0_63 = arith.constant 0 : index
    %c0_64 = arith.constant 0 : index
    %115 = vector.load %arg9[%c0_63, %c0_64] : memref<1x96xf32, #tpu.memory_space<vmem>>, vector<1x96xf32>
    %cst_65 = arith.constant dense<0.000000e+00> : vector<4x96xf32>
    %116 = tpu.matmul %111, %114, %cst_65 {dimension_numbers = #tpu.dot_dimension_numbers<[1], [0], [0], [1], [0, 0, 1, 1], [], []>} : vector<4x128xbf16>, vector<128x96xbf16>, vector<4x96xf32> -> vector<4x96xf32>
    %117 = vector.broadcast %115 : vector<1x96xf32> to vector<4x96xf32>
    %118 = arith.addf %116, %117 : vector<4x96xf32>
    %cst_66 = arith.constant 0.000000e+00 : f32
    %119 = vector.broadcast %cst_66 : f32 to vector<4x96xf32>
    %120 = arith.subf %119, %118 : vector<4x96xf32>
    %121 = math.exp %120 : vector<4x96xf32>
    %cst_67 = arith.constant 1.000000e+00 : f32
    %122 = vector.broadcast %cst_67 : f32 to vector<4x96xf32>
    %123 = arith.addf %122, %121 : vector<4x96xf32>
    %cst_68 = arith.constant 1.000000e+00 : f32
    %124 = vector.broadcast %cst_68 : f32 to vector<4x96xf32>
    %125 = arith.divf %124, %123 : vector<4x96xf32>
    %c0_69 = arith.constant 0 : index
    %c0_70 = arith.constant 0 : index
    %c0_71 = arith.constant 0 : index
    %126 = vector.load %arg10[%c0_69, %c0_70, %c0_71] : memref<1x8x96xf32, #tpu.memory_space<vmem>>, vector<1x4x96xf32>
    %127 = vector.shape_cast %126 : vector<1x4x96xf32> to vector<4x96xf32>
    %128 = vector.shape_cast %125 : vector<4x96xf32> to vector<1x4x96xf32>
    tpu.vector_store %arg10[%c0_69, %c0_70, %c0_71], %128 {strides = array<i32>} : memref<1x8x96xf32, #tpu.memory_space<vmem>>, vector<1x4x96xf32>,
    %cst_72 = arith.constant dense<0.000000e+00> : vector<4x96xf32>
    %129 = tpu.matmul %113, %114, %cst_72 {dimension_numbers = #tpu.dot_dimension_numbers<[1], [0], [0], [1], [0, 0, 1, 1], [], []>} : vector<4x128xbf16>, vector<128x96xbf16>, vector<4x96xf32> -> vector<4x96xf32>
    %130 = vector.broadcast %115 : vector<1x96xf32> to vector<4x96xf32>
    %131 = arith.addf %129, %130 : vector<4x96xf32>
    %cst_73 = arith.constant 0.000000e+00 : f32
    %132 = vector.broadcast %cst_73 : f32 to vector<4x96xf32>
    %133 = arith.subf %132, %131 : vector<4x96xf32>
    %134 = math.exp %133 : vector<4x96xf32>
    %cst_74 = arith.constant 1.000000e+00 : f32
    %135 = vector.broadcast %cst_74 : f32 to vector<4x96xf32>
    %136 = arith.addf %135, %134 : vector<4x96xf32>
    %cst_75 = arith.constant 1.000000e+00 : f32
    %137 = vector.broadcast %cst_75 : f32 to vector<4x96xf32>
    %138 = arith.divf %137, %136 : vector<4x96xf32>
    %c0_76 = arith.constant 0 : index
    %c4 = arith.constant 4 : index
    %c0_77 = arith.constant 0 : index
    %139 = vector.load %arg10[%c0_76, %c4, %c0_77] : memref<1x8x96xf32, #tpu.memory_space<vmem>>, vector<1x4x96xf32>
    %140 = vector.shape_cast %139 : vector<1x4x96xf32> to vector<4x96xf32>
    %141 = vector.shape_cast %138 : vector<4x96xf32> to vector<1x4x96xf32>
    tpu.vector_store %arg10[%c0_76, %c4, %c0_77], %141 {strides = array<i32>} : memref<1x8x96xf32, #tpu.memory_space<vmem>>, vector<1x4x96xf32>,
    return
  }
  func.func @transform_0(%arg0: i32) -> (i32, i32, i32, i32) {
    %c0_i32 = arith.constant 0 : i32
    %c0_i32_0 = arith.constant 0 : i32
    %c0_i32_1 = arith.constant 0 : i32
    %c0_i32_2 = arith.constant 0 : i32
    return %arg0, %c0_i32, %c0_i32_0, %c0_i32_1 : i32, i32, i32, i32
  }
  func.func @transform_1(%arg0: i32) -> (i32, i32, i32) {
    %c0_i32 = arith.constant 0 : i32
    %c0_i32_0 = arith.constant 0 : i32
    %c0_i32_1 = arith.constant 0 : i32
    %c0_i32_2 = arith.constant 0 : i32
    return %c0_i32, %c0_i32_0, %c0_i32_1 : i32, i32, i32
  }
  func.func @transform_2(%arg0: i32) -> (i32, i32, i32) {
    %c0_i32 = arith.constant 0 : i32
    %c0_i32_0 = arith.constant 0 : i32
    %c0_i32_1 = arith.constant 0 : i32
    %c0_i32_2 = arith.constant 0 : i32
    return %c0_i32, %c0_i32_0, %c0_i32_1 : i32, i32, i32
  }
  func.func @transform_3(%arg0: i32) -> (i32, i32) {
    %c0_i32 = arith.constant 0 : i32
    %c0_i32_0 = arith.constant 0 : i32
    %c0_i32_1 = arith.constant 0 : i32
    return %c0_i32, %c0_i32_0 : i32, i32
  }
  func.func @transform_4(%arg0: i32) -> (i32, i32) {
    %c0_i32 = arith.constant 0 : i32
    %c0_i32_0 = arith.constant 0 : i32
    %c0_i32_1 = arith.constant 0 : i32
    return %c0_i32, %c0_i32_0 : i32, i32
  }
  func.func @transform_5(%arg0: i32) -> (i32, i32) {
    %c0_i32 = arith.constant 0 : i32
    %c0_i32_0 = arith.constant 0 : i32
    %c0_i32_1 = arith.constant 0 : i32
    return %c0_i32, %c0_i32_0 : i32, i32
  }
  func.func @transform_6(%arg0: i32) -> (i32, i32) {
    %c0_i32 = arith.constant 0 : i32
    %c0_i32_0 = arith.constant 0 : i32
    %c0_i32_1 = arith.constant 0 : i32
    return %c0_i32, %c0_i32_0 : i32, i32
  }
  func.func @transform_7(%arg0: i32) -> (i32, i32) {
    %c0_i32 = arith.constant 0 : i32
    %c0_i32_0 = arith.constant 0 : i32
    %c0_i32_1 = arith.constant 0 : i32
    return %c0_i32, %c0_i32_0 : i32, i32
  }
  func.func @transform_8(%arg0: i32) -> (i32, i32) {
    %c0_i32 = arith.constant 0 : i32
    %c0_i32_0 = arith.constant 0 : i32
    %c0_i32_1 = arith.constant 0 : i32
    return %c0_i32, %c0_i32_0 : i32, i32
  }
  func.func @transform_9(%arg0: i32) -> (i32, i32, i32) {
    %c0_i32 = arith.constant 0 : i32
    %c0_i32_0 = arith.constant 0 : i32
    %c0_i32_1 = arith.constant 0 : i32
    return %arg0, %c0_i32, %c0_i32_0 : i32, i32, i32
  }
}

</mosaic_0001>

<llo_original>
// kernel: tile.38
$region0: #{tile.38}
  #allocation0 [shape = 's32[1]{0}', space=sflag, size = 0x4, scoped, tag = 'scoped memory for tile.38']
  %s0 = inlined_call_operand.vmem [shape: f32[3], index: 0, kind: input, shape index: {}]
  %s1 = inlined_call_operand.vmem [shape: f32[32,3], index: 1, kind: output, shape index: {}]
  // Predicated region
  $region2: #{tile.38} parent=0 // pred_check
    _
  $region3: #{tile.38} parent=0 // pred_check_branch
    %3 = sbr.rel (0) target = $region5
  $region4: #{tile.38} parent=0 // pred_region
    _
  $region5: #{tile.38} parent=0 // pred_fallthru
    _
  %v4 = vld [vmem:[%s0] ss:$0 sm:$0xff]
  %5 = vst [vmem:[%s1] sm:$0xff] %v4
  %s6 = scalar_lea.vmem %s1, 8
  %7 = vst [vmem:[%s6] sm:$0xff] %v4
  %s8 = scalar_lea.vmem %s1, 16
  %9 = vst [vmem:[%s8] sm:$0xff] %v4
  %s10 = scalar_lea.vmem %s1, 24
  %11 = vst [vmem:[%s10] sm:$0xff] %v4

// kernel: tile.34
$region0: #{tile.34}
  %s0 = inlined_call_operand.vmem [shape: f32[16,16], index: 0, kind: input, shape index: {}]
  %s1 = inlined_call_operand.vmem [shape: f32[1,256], index: 1, kind: output, shape index: {}]
  $region1: #{tile.34} parent=0
    #allocation0 [shape = 'u8[8192]{0}', space=vmem, size = 0x2000, scoped, tag = 'scoped mem for output reshape']
    %s2 = smov 3
    %v3 = vld [vmem:[%s0] ss:$8 sm:%s2]
    %vm4 = vcmask 130048
    %5 = vst.msk [vmem:[#allocation0] ss:$8 sm:$0x3] %vm4, %v3
    %s6 = scalar_lea.vmem %s0, 7
    %s7 = smov 3
    %v8 = vld [vmem:[%s6] ss:$8 sm:%s7]
    %9 = vrot.lane.b32.xlu0 %v8, 112
    %v10 = vpop.permute.xlu0 %9
    %vm11 = vcmask 1048448
    %12 = vst.msk [vmem:[#allocation0] ss:$8 sm:$0x3] %vm11, %v10
    %s13 = scalar_lea.vmem %s0, 6
    %s14 = smov 3
    %v15 = vld [vmem:[%s13] ss:$8 sm:%s14]
    %16 = vrot.lane.b32.xlu0 %v15, 96
    %v17 = vpop.permute.xlu0 %16
    %vm18 = vcmask 917248
    %19 = vst.msk [vmem:[#allocation0] ss:$8 sm:$0x3] %vm18, %v17
    %s20 = scalar_lea.vmem %s0, 5
    %s21 = smov 3
    %v22 = vld [vmem:[%s20] ss:$8 sm:%s21]
    %23 = vrot.lane.b32.xlu0 %v22, 80
    %v24 = vpop.permute.xlu0 %23
    %vm25 = vcmask 786048
    %26 = vst.msk [vmem:[#allocation0] ss:$8 sm:$0x3] %vm25, %v24
    %s27 = scalar_lea.vmem %s0, 4
    %s28 = smov 3
    %v29 = vld [vmem:[%s27] ss:$8 sm:%s28]
    %30 = vrot.lane.b32.xlu0 %v29, 64
    %v31 = vpop.permute.xlu0 %30
    %vm32 = vcmask 654848
    %33 = vst.msk [vmem:[#allocation0] ss:$8 sm:$0x3] %vm32, %v31
    %s34 = scalar_lea.vmem %s0, 3
    %s35 = smov 3
    %v36 = vld [vmem:[%s34] ss:$8 sm:%s35]
    %37 = vrot.lane.b32.xlu0 %v36, 48
    %v38 = vpop.permute.xlu0 %37
    %vm39 = vcmask 523648
    %40 = vst.msk [vmem:[#allocation0] ss:$8 sm:$0x3] %vm39, %v38
    %s41 = scalar_lea.vmem %s0, 2
    %s42 = smov 3
    %v43 = vld [vmem:[%s41] ss:$8 sm:%s42]
    %44 = vrot.lane.b32.xlu0 %v43, 32
    %v45 = vpop.permute.xlu0 %44
    %vm46 = vcmask 392448
    %47 = vst.msk [vmem:[#allocation0] ss:$8 sm:$0x3] %vm46, %v45
    %s48 = scalar_lea.vmem %s0, 1
    %s49 = smov 3
    %v50 = vld [vmem:[%s48] ss:$8 sm:%s49]
    %51 = vrot.lane.b32.xlu0 %v50, 16
    %v52 = vpop.permute.xlu0 %51
    %vm53 = vcmask 261248
    %54 = vst.msk [vmem:[#allocation0] ss:$8 sm:$0x3] %vm53, %v52
    %s56 = ssub.s32 2, 1
    %v57 = vld [vmem:[#allocation0] sm:%s56]
    %s59 = ssub.s32 2, 1
    %60 = vst [vmem:[%s1] sm:%s59] %v57
    %s61 = scalar_lea.vmem [#allocation0], 8
    %v62 = vld [vmem:[%s61] sm:%s56]
    %s64 = ssub.s32 2, 1
    %s65 = scalar_lea.vmem %s1, 1
    %66 = vst [vmem:[%s65] sm:%s64] %v62

// kernel: tile.39
$region0: #{tile.39}
  %s0 = inlined_call_operand.vmem [shape: f32[32,3], index: 0, kind: input, shape index: {}]
  %s1 = inlined_call_operand.vmem [shape: f32[1,96], index: 1, kind: output, shape index: {}]
  $region1: #{tile.39} parent=0
    #allocation0 [shape = 'u8[4096]{0}', space=vmem, size = 0x1000, scoped, tag = 'scoped mem for output reshape']
    %v2 = vld [vmem:[%s0] sm:$0x1]
    %vm3 = vcmask 23552
    %4 = vst.msk [vmem:[#allocation0] sm:$0x1] %vm3, %v2
    %s5 = scalar_lea.vmem %s0, 31
    %v6 = vld [vmem:[%s5] sm:$0x1]
    %7 = vrot.lane.b32.xlu0 %v6, 93
    %v8 = vpop.permute.xlu0 %7
    %vm9 = vcmask 786152
    %10 = vst.msk [vmem:[#allocation0] sm:$0x1] %vm9, %v8
    %s11 = scalar_lea.vmem %s0, 30
    %v12 = vld [vmem:[%s11] sm:$0x1]
    %13 = vrot.lane.b32.xlu0 %v12, 90
    %v14 = vpop.permute.xlu0 %13
    %vm15 = vcmask 761552
    %16 = vst.msk [vmem:[#allocation0] sm:$0x1] %vm15, %v14
    %s17 = scalar_lea.vmem %s0, 29
    %v18 = vld [vmem:[%s17] sm:$0x1]
    %19 = vrot.lane.b32.xlu0 %v18, 87
    %v20 = vpop.permute.xlu0 %19
    %vm21 = vcmask 736952
    %22 = vst.msk [vmem:[#allocation0] sm:$0x1] %vm21, %v20
    %s23 = scalar_lea.vmem %s0, 28
    %v24 = vld [vmem:[%s23] sm:$0x1]
    %25 = vrot.lane.b32.xlu0 %v24, 84
    %v26 = vpop.permute.xlu0 %25
    %vm27 = vcmask 712352
    %28 = vst.msk [vmem:[#allocation0] sm:$0x1] %vm27, %v26
    %s29 = scalar_lea.vmem %s0, 27
    %v30 = vld [vmem:[%s29] sm:$0x1]
    %31 = vrot.lane.b32.xlu0 %v30, 81
    %v32 = vpop.permute.xlu0 %31
    %vm33 = vcmask 687752
    %34 = vst.msk [vmem:[#allocation0] sm:$0x1] %vm33, %v32
    %s35 = scalar_lea.vmem %s0, 26
    %v36 = vld [vmem:[%s35] sm:$0x1]
    %37 = vrot.lane.b32.xlu0 %v36, 78
    %v38 = vpop.permute.xlu0 %37
    %vm39 = vcmask 663152
    %40 = vst.msk [vmem:[#allocation0] sm:$0x1] %vm39, %v38
    %s41 = scalar_lea.vmem %s0, 25
    %v42 = vld [vmem:[%s41] sm:$0x1]
    %43 = vrot.lane.b32.xlu0 %v42, 75
    %v44 = vpop.permute.xlu0 %43
    %vm45 = vcmask 638552
    %46 = vst.msk [vmem:[#allocation0] sm:$0x1] %vm45, %v44
    %s47 = scalar_lea.vmem %s0, 24
    %v48 = vld [vmem:[%s47] sm:$0x1]
    %49 = vrot.lane.b32.xlu0 %v48, 72
    %v50 = vpop.permute.xlu0 %49
    %vm51 = vcmask 613952
    %52 = vst.msk [vmem:[#allocation0] sm:$0x1] %vm51, %v50
    %s53 = scalar_lea.vmem %s0, 23
    %v54 = vld [vmem:[%s53] sm:$0x1]
    %55 = vrot.lane.b32.xlu0 %v54, 69
    %v56 = vpop.permute.xlu0 %55
    %vm57 = vcmask 589352
    %58 = vst.msk [vmem:[#allocation0] sm:$0x1] %vm57, %v56
    %s59 = scalar_lea.vmem %s0, 22
    %v60 = vld [vmem:[%s59] sm:$0x1]
    %61 = vrot.lane.b32.xlu0 %v60, 66
    %v62 = vpop.permute.xlu0 %61
    %vm63 = vcmask 564752
    %64 = vst.msk [vmem:[#allocation0] sm:$0x1] %vm63, %v62
    %s65 = scalar_lea.vmem %s0, 21
    %v66 = vld [vmem:[%s65] sm:$0x1]
    %67 = vrot.lane.b32.xlu0 %v66, 63
    %v68 = vpop.permute.xlu0 %67
    %vm69 = vcmask 540152
    %70 = vst.msk [vmem:[#allocation0] sm:$0x1] %vm69, %v68
    %s71 = scalar_lea.vmem %s0, 20
    %v72 = vld [vmem:[%s71] sm:$0x1]
    %73 = vrot.lane.b32.xlu0 %v72, 60
    %v74 = vpop.permute.xlu0 %73
    %vm75 = vcmask 515552
    %76 = vst.msk [vmem:[#allocation0] sm:$0x1] %vm75, %v74
    %s77 = scalar_lea.vmem %s0, 19
    %v78 = vld [vmem:[%s77] sm:$0x1]
    %79 = vrot.lane.b32.xlu0 %v78, 57
    %v80 = vpop.permute.xlu0 %79
    %vm81 = vcmask 490952
    %82 = vst.msk [vmem:[#allocation0] sm:$0x1] %vm81, %v80
    %s83 = scalar_lea.vmem %s0, 18
    %v84 = vld [vmem:[%s83] sm:$0x1]
    %85 = vrot.lane.b32.xlu0 %v84, 54
    %v86 = vpop.permute.xlu0 %85
    %vm87 = vcmask 466352
    %88 = vst.msk [vmem:[#allocation0] sm:$0x1] %vm87, %v86
    %s89 = scalar_lea.vmem %s0, 17
    %v90 = vld [vmem:[%s89] sm:$0x1]
    %91 = vrot.lane.b32.xlu0 %v90, 51
    %v92 = vpop.permute.xlu0 %91
    %vm93 = vcmask 441752
    %94 = vst.msk [vmem:[#allocation0] sm:$0x1] %vm93, %v92
    %s95 = scalar_lea.vmem %s0, 16
    %v96 = vld [vmem:[%s95] sm:$0x1]
    %97 = vrot.lane.b32.xlu0 %v96, 48
    %v98 = vpop.permute.xlu0 %97
    %vm99 = vcmask 417152
    %100 = vst.msk [vmem:[#allocation0] sm:$0x1] %vm99, %v98
    %s101 = scalar_lea.vmem %s0, 15
    %v102 = vld [vmem:[%s101] sm:$0x1]
    %103 = vrot.lane.b32.xlu0 %v102, 45
    %v104 = vpop.permute.xlu0 %103
    %vm105 = vcmask 392552
    %106 = vst.msk [vmem:[#allocation0] sm:$0x1] %vm105, %v104
    %s107 = scalar_lea.vmem %s0, 14
    %v108 = vld [vmem:[%s107] sm:$0x1]
    %109 = vrot.lane.b32.xlu0 %v108, 42
    %v110 = vpop.permute.xlu0 %109
    %vm111 = vcmask 367952
    %112 = vst.msk [vmem:[#allocation0] sm:$0x1] %vm111, %v110
    %s113 = scalar_lea.vmem %s0, 13
    %v114 = vld [vmem:[%s113] sm:$0x1]
    %115 = vrot.lane.b32.xlu0 %v114, 39
    %v116 = vpop.permute.xlu0 %115
    %vm117 = vcmask 343352
    %118 = vst.msk [vmem:[#allocation0] sm:$0x1] %vm117, %v116
    %s119 = scalar_lea.vmem %s0, 12
    %v120 = vld [vmem:[%s119] sm:$0x1]
    %121 = vrot.lane.b32.xlu0 %v120, 36
    %v122 = vpop.permute.xlu0 %121
    %vm123 = vcmask 318752
    %124 = vst.msk [vmem:[#allocation0] sm:$0x1] %vm123, %v122
    %s125 = scalar_lea.vmem %s0, 11
    %v126 = vld [vmem:[%s125] sm:$0x1]
    %127 = vrot.lane.b32.xlu0 %v126, 33
    %v128 = vpop.permute.xlu0 %127
    %vm129 = vcmask 294152
    %130 = vst.msk [vmem:[#allocation0] sm:$0x1] %vm129, %v128
    %s131 = scalar_lea.vmem %s0, 10
    %v132 = vld [vmem:[%s131] sm:$0x1]
    %133 = vrot.lane.b32.xlu0 %v132, 30
    %v134 = vpop.permute.xlu0 %133
    %vm135 = vcmask 269552
    %136 = vst.msk [vmem:[#allocation0] sm:$0x1] %vm135, %v134
    %s137 = scalar_lea.vmem %s0, 9
    %v138 = vld [vmem:[%s137] sm:$0x1]
    %139 = vrot.lane.b32.xlu0 %v138, 27
    %v140 = vpop.permute.xlu0 %139
    %vm141 = vcmask 244952
    %142 = vst.msk [vmem:[#allocation0] sm:$0x1] %vm141, %v140
    %s143 = scalar_lea.vmem %s0, 8
    %v144 = vld [vmem:[%s143] sm:$0x1]
    %145 = vrot.lane.b32.xlu0 %v144, 24
    %v146 = vpop.permute.xlu0 %145
    %vm147 = vcmask 220352
    %148 = vst.msk [vmem:[#allocation0] sm:$0x1] %vm147, %v146
    %s149 = scalar_lea.vmem %s0, 7
    %v150 = vld [vmem:[%s149] sm:$0x1]
    %151 = vrot.lane.b32.xlu0 %v150, 21
    %v152 = vpop.permute.xlu0 %151
    %vm153 = vcmask 195752
    %154 = vst.msk [vmem:[#allocation0] sm:$0x1] %vm153, %v152
    %s155 = scalar_lea.vmem %s0, 6
    %v156 = vld [vmem:[%s155] sm:$0x1]
    %157 = vrot.lane.b32.xlu0 %v156, 18
    %v158 = vpop.permute.xlu0 %157
    %vm159 = vcmask 171152
    %160 = vst.msk [vmem:[#allocation0] sm:$0x1] %vm159, %v158
    %s161 = scalar_lea.vmem %s0, 5
    %v162 = vld [vmem:[%s161] sm:$0x1]
    %163 = vrot.lane.b32.xlu0 %v162, 15
    %v164 = vpop.permute.xlu0 %163
    %vm165 = vcmask 146552
    %166 = vst.msk [vmem:[#allocation0] sm:$0x1] %vm165, %v164
    %s167 = scalar_lea.vmem %s0, 4
    %v168 = vld [vmem:[%s167] sm:$0x1]
    %169 = vrot.lane.b32.xlu0 %v168, 12
    %v170 = vpop.permute.xlu0 %169
    %vm171 = vcmask 121952
    %172 = vst.msk [vmem:[#allocation0] sm:$0x1] %vm171, %v170
    %s173 = scalar_lea.vmem %s0, 3
    %v174 = vld [vmem:[%s173] sm:$0x1]
    %175 = vrot.lane.b32.xlu0 %v174, 9
    %v176 = vpop.permute.xlu0 %175
    %vm177 = vcmask 97352
    %178 = vst.msk [vmem:[#allocation0] sm:$0x1] %vm177, %v176
    %s179 = scalar_lea.vmem %s0, 2
    %v180 = vld [vmem:[%s179] sm:$0x1]
    %181 = vrot.lane.b32.xlu0 %v180, 6
    %v182 = vpop.permute.xlu0 %181
    %vm183 = vcmask 72752
    %184 = vst.msk [vmem:[#allocation0] sm:$0x1] %vm183, %v182
    %s185 = scalar_lea.vmem %s0, 1
    %v186 = vld [vmem:[%s185] sm:$0x1]
    %187 = vrot.lane.b32.xlu0 %v186, 3
    %v188 = vpop.permute.xlu0 %187
    %vm189 = vcmask 48152
    %190 = vst.msk [vmem:[#allocation0] sm:$0x1] %vm189, %v188
    %s192 = ssub.s32 2, 1
    %v193 = vld [vmem:[#allocation0] sm:%s192]
    %s195 = ssub.s32 2, 1
    %196 = vst [vmem:[%s1] sm:%s195] %v193

// kernel: tile.33
$region0: #{tile.33}
  #allocation0 [shape = 's32[1]{0}', space=sflag, size = 0x4, scoped, tag = 'scoped memory for tile.33']
  %s0 = inlined_call_operand.vmem [shape: f32[16], index: 0, kind: input, shape index: {}]
  %s1 = inlined_call_operand.vmem [shape: f32[16,16], index: 1, kind: output, shape index: {}]
  // Predicated region
  $region2: #{tile.33} parent=0 // pred_check
    _
  $region3: #{tile.33} parent=0 // pred_check_branch
    %3 = sbr.rel (0) target = $region5
  $region4: #{tile.33} parent=0 // pred_region
    _
  $region5: #{tile.33} parent=0 // pred_fallthru
    _
  %v4 = vld [vmem:[%s0] ss:$0 sm:$0xff]
  %5 = vst [vmem:[%s1] sm:$0xff] %v4
  %s6 = scalar_lea.vmem %s1, 8
  %7 = vst [vmem:[%s6] sm:$0xff] %v4

// kernel: tile.23
$region0: #{tile.23}
  #allocation0 [shape = 's32[1]{0}', space=sflag, size = 0x4, scoped, tag = 'scoped memory for tile.23']
  %s0 = inlined_call_operand.vmem [shape: f32[16], index: 0, kind: input, shape index: {}]
  %s1 = inlined_call_operand.vmem [shape: f32[8,16], index: 1, kind: output, shape index: {}]
  // Predicated region
  $region2: #{tile.23} parent=0 // pred_check
    _
  $region3: #{tile.23} parent=0 // pred_check_branch
    %3 = sbr.rel (0) target = $region5
  $region4: #{tile.23} parent=0 // pred_region
    _
  $region5: #{tile.23} parent=0 // pred_fallthru
    _
  %v4 = vld [vmem:[%s0] ss:$0 sm:$0xff]
  %5 = vst [vmem:[%s1] sm:$0xff] %v4

// kernel: tile.24
$region0: #{tile.24}
  %s0 = inlined_call_operand.vmem [shape: f32[8,16], index: 0, kind: input, shape index: {}]
  %s1 = inlined_call_operand.vmem [shape: f32[1,128], index: 1, kind: output, shape index: {}]
  $region1: #{tile.24} parent=0
    #allocation0 [shape = 'u8[4096]{0}', space=vmem, size = 0x1000, scoped, tag = 'scoped mem for output reshape']
    %v2 = vld [vmem:[%s0] sm:$0x1]
    %vm3 = vcmask 130048
    %4 = vst.msk [vmem:[#allocation0] sm:$0x1] %vm3, %v2
    %s5 = scalar_lea.vmem %s0, 7
    %v6 = vld [vmem:[%s5] sm:$0x1]
    %7 = vrot.lane.b32.xlu0 %v6, 112
    %v8 = vpop.permute.xlu0 %7
    %vm9 = vcmask 1048448
    %10 = vst.msk [vmem:[#allocation0] sm:$0x1] %vm9, %v8
    %s11 = scalar_lea.vmem %s0, 6
    %v12 = vld [vmem:[%s11] sm:$0x1]
    %13 = vrot.lane.b32.xlu0 %v12, 96
    %v14 = vpop.permute.xlu0 %13
    %vm15 = vcmask 917248
    %16 = vst.msk [vmem:[#allocation0] sm:$0x1] %vm15, %v14
    %s17 = scalar_lea.vmem %s0, 5
    %v18 = vld [vmem:[%s17] sm:$0x1]
    %19 = vrot.lane.b32.xlu0 %v18, 80
    %v20 = vpop.permute.xlu0 %19
    %vm21 = vcmask 786048
    %22 = vst.msk [vmem:[#allocation0] sm:$0x1] %vm21, %v20
    %s23 = scalar_lea.vmem %s0, 4
    %v24 = vld [vmem:[%s23] sm:$0x1]
    %25 = vrot.lane.b32.xlu0 %v24, 64
    %v26 = vpop.permute.xlu0 %25
    %vm27 = vcmask 654848
    %28 = vst.msk [vmem:[#allocation0] sm:$0x1] %vm27, %v26
    %s29 = scalar_lea.vmem %s0, 3
    %v30 = vld [vmem:[%s29] sm:$0x1]
    %31 = vrot.lane.b32.xlu0 %v30, 48
    %v32 = vpop.permute.xlu0 %31
    %vm33 = vcmask 523648
    %34 = vst.msk [vmem:[#allocation0] sm:$0x1] %vm33, %v32
    %s35 = scalar_lea.vmem %s0, 2
    %v36 = vld [vmem:[%s35] sm:$0x1]
    %37 = vrot.lane.b32.xlu0 %v36, 32
    %v38 = vpop.permute.xlu0 %37
    %vm39 = vcmask 392448
    %40 = vst.msk [vmem:[#allocation0] sm:$0x1] %vm39, %v38
    %s41 = scalar_lea.vmem %s0, 1
    %v42 = vld [vmem:[%s41] sm:$0x1]
    %43 = vrot.lane.b32.xlu0 %v42, 16
    %v44 = vpop.permute.xlu0 %43
    %vm45 = vcmask 261248
    %46 = vst.msk [vmem:[#allocation0] sm:$0x1] %vm45, %v44
    %s48 = ssub.s32 2, 1
    %v49 = vld [vmem:[#allocation0] sm:%s48]
    %s51 = ssub.s32 2, 1
    %52 = vst [vmem:[%s1] sm:%s51] %v49

// kernel: tile.28
$region0: #{tile.28}
  #allocation0 [shape = 's32[1]{0}', space=sflag, size = 0x4, scoped, tag = 'scoped memory for tile.28']
  %s0 = inlined_call_operand.vmem [shape: f32[4], index: 0, kind: input, shape index: {}]
  %s1 = inlined_call_operand.vmem [shape: f32[4,4], index: 1, kind: output, shape index: {}]
  // Predicated region
  $region2: #{tile.28} parent=0 // pred_check
    _
  $region3: #{tile.28} parent=0 // pred_check_branch
    %3 = sbr.rel (0) target = $region5
  $region4: #{tile.28} parent=0 // pred_region
    _
  $region5: #{tile.28} parent=0 // pred_fallthru
    _
  %v4 = vld [vmem:[%s0] ss:$0 sm:$0xff]
  %5 = vst [vmem:[%s1] sm:$0xf] %v4

// kernel: tile.29
$region0: #{tile.29}
  %s0 = inlined_call_operand.vmem [shape: f32[4,4], index: 0, kind: input, shape index: {}]
  %s1 = inlined_call_operand.vmem [shape: f32[1,16], index: 1, kind: output, shape index: {}]
  $region1: #{tile.29} parent=0
    #allocation0 [shape = 'u8[4096]{0}', space=vmem, size = 0x1000, scoped, tag = 'scoped mem for output reshape']
    #allocation1 [shape = 'u8[4096]{0}', space=vmem, size = 0x1000, scoped, tag = 'scoped mem for input reshape']
    %s3 = ssub.s32 16, 1
    %v4 = vld [vmem:[%s0] sm:%s3]
    %5 = vst [vmem:[#allocation1] sm:%s3] %v4
    %v6 = vld [vmem:[#allocation1] sm:$0x1]
    %vm7 = vcmask 31744
    %8 = vst.msk [vmem:[#allocation0] sm:$0x1] %vm7, %v6
    %s9 = scalar_lea.vmem [#allocation1], 3
    %v10 = vld [vmem:[%s9] sm:$0x1]
    %11 = vrot.lane.b32.xlu0 %v10, 12
    %v12 = vpop.permute.xlu0 %11
    %vm13 = vcmask 130144
    %14 = vst.msk [vmem:[#allocation0] sm:$0x1] %vm13, %v12
    %s15 = scalar_lea.vmem [#allocation1], 2
    %v16 = vld [vmem:[%s15] sm:$0x1]
    %17 = vrot.lane.b32.xlu0 %v16, 8
    %v18 = vpop.permute.xlu0 %17
    %vm19 = vcmask 97344
    %20 = vst.msk [vmem:[#allocation0] sm:$0x1] %vm19, %v18
    %s21 = scalar_lea.vmem [#allocation1], 1
    %v22 = vld [vmem:[%s21] sm:$0x1]
    %23 = vrot.lane.b32.xlu0 %v22, 4
    %v24 = vpop.permute.xlu0 %23
    %vm25 = vcmask 64544
    %26 = vst.msk [vmem:[#allocation0] sm:$0x1] %vm25, %v24
    %s28 = ssub.s32 2, 1
    %v29 = vld [vmem:[#allocation0] sm:%s28]
    %s31 = ssub.s32 2, 1
    %32 = vst [vmem:[%s1] sm:%s31] %v29

// kernel: conv_autoencoder_forward.1
$region0: #{conv_autoencoder_forward.1}
  #allocation0 [shape = 'u32[]', space=smem, size = 0x4, offset = 0x4, fixed_abs, tag = 'smem constant byte address 0x4 - core index']
  #allocation1 [shape = 'u32[72,128]{1,0:T(1,128)}', space=vmem, size = 0x9000, scoped, tag = 'internal scratch']
  %s0 = inlined_call_operand.vmem [shape: bf16[2,4,5,48], index: 0, kind: input, shape index: {}]
  %s1 = inlined_call_operand.vmem [shape: bf16[3,48,256], index: 1, kind: input, shape index: {}]
  %s2 = inlined_call_operand.vmem [shape: bf16[3,128,32], index: 2, kind: input, shape index: {}]
  %s3 = inlined_call_operand.vmem [shape: bf16[16,256], index: 3, kind: input, shape index: {}]
  %s4 = inlined_call_operand.vmem [shape: bf16[128,96], index: 4, kind: input, shape index: {}]
  %s5 = inlined_call_operand.vmem [shape: f32[1,128], index: 5, kind: input, shape index: {}]
  %s6 = inlined_call_operand.vmem [shape: f32[1,16], index: 6, kind: input, shape index: {}]
  %s7 = inlined_call_operand.vmem [shape: f32[1,256], index: 7, kind: input, shape index: {}]
  %s8 = inlined_call_operand.vmem [shape: f32[1,96], index: 8, kind: input, shape index: {}]
  %s9 = inlined_call_operand.vmem [shape: f32[2,8,96], index: 9, kind: output, shape index: {}]
  %s10 = sld [smem:[#allocation0]]
  $region69: #{conv_autoencoder_forward.1} parent=0
    _
  %s12 = ssub.s32 1, %s10
  %s13 = scalar_select 0, %s12, %s10
  loop: start=0, step=1, limit=4
  $region2: #{conv_autoencoder_forward.1} parent=0 // loop_pre_header
    _
  $region3: #{conv_autoencoder_forward.1} parent=0 // loop_header
    %s15 = sphi 0, %s19
    %p16 = scmp.ge.s32.totalorder %s15, 4
    %s25 = sphi 0, %s27
    %s28 = sphi 0, %s25
    %s29 = sphi 0, %s28
    %s45 = sphi 0, %s29
    %s49 = sphi 0, %s49
    %s51 = sphi 0, %s49
    %s52 = sphi 0, %s51
    %s66 = sphi 0, %s52
    %s70 = sphi 0, %s70
    %s72 = sphi 0, %s70
    %s73 = sphi 0, %s72
    %s87 = sphi 0, %s73
    %s91 = sphi 0, %s91
    %s93 = sphi 0, %s91
    %s94 = sphi 0, %s93
    %s108 = sphi 0, %s94
    %s112 = sphi 0, %s112
    %s114 = sphi 0, %s112
    %s115 = sphi 0, %s114
    %s129 = sphi 0, %s115
    %s133 = sphi 0, %s133
    %s135 = sphi 0, %s133
    %s136 = sphi 0, %s135
    %s150 = sphi 0, %s136
    %s154 = sphi 0, %s154
    %s156 = sphi 0, %s154
    %s157 = sphi 0, %s156
    %s171 = sphi 0, %s157
    %s175 = sphi 0, %s175
    %s177 = sphi 0, %s175
    %s178 = sphi 0, %s177
    %s192 = sphi 0, %s178
    %s196 = sphi 0, %s196
    %s198 = sphi 0, %s196
    %s199 = sphi 0, %s198
    %s213 = sphi 0, %s199
    %s219 = sphi 0, %s221
    %s222 = sphi 0, %s219
    %s223 = sphi 0, %s222
    %s239 = sphi 0, %s223
  $region4: #{conv_autoencoder_forward.1} parent=0 // loop_header_branch
    %18 = sbr.rel (%p16) target = $region8
  $region5: #{conv_autoencoder_forward.1} parent=0 // loop_body
    %s20 = ssub.s32 %s15, 1
    %s21 = ssub.s32 %s15, 2
    %s22 = sadd.s32 %s15, 1
    %s23 = ssub.s32 %s15, %s22
    %p24 = scmp.eq.s32.totalorder %s23, 0
    %s26 = sadd.s32 %s25, 1
    %s27 = scalar_select %p24, %s25, %s26
    %p30 = pneg %p24
    %p31 = scmp.eq.s32.totalorder %s15, 1
    %p32 = por %p30, %p31
    %p33 = scmp.ne.s32.totalorder %s25, %s28
    %p34 = scmp.eq.s32.totalorder %s15, 0
    %p35 = por %p33, %p34
    %p36 = scmp.ne.s32.totalorder %s25, %s28
    %p37 = scmp.eq.s32.totalorder %s20, 1
    %p38 = por %p36, %p37
    %p39 = scmp.ne.s32.totalorder %s28, %s29
    %p40 = scmp.eq.s32.totalorder %s20, 0
    %p41 = por %p39, %p40
    %p42 = scmp.ne.s32.totalorder %s28, %s29
    %p43 = scmp.eq.s32.totalorder %s21, 1
    %p44 = por %p42, %p43
    %p46 = scmp.ne.s32.totalorder %s29, %s45
    %p47 = scmp.eq.s32.totalorder %s21, 0
    %p48 = por %p46, %p47
    %s50 = sadd.s32 %s49, 1
    %p53 = scmp.eq.s32.totalorder %s15, 1
    %p54 = scmp.ne.s32.totalorder %s49, %s51
    %p55 = scmp.eq.s32.totalorder %s15, 0
    %p56 = por %p54, %p55
    %p57 = scmp.ne.s32.totalorder %s49, %s51
    %p58 = scmp.eq.s32.totalorder %s20, 1
    %p59 = por %p57, %p58
    %p60 = scmp.ne.s32.totalorder %s51, %s52
    %p61 = scmp.eq.s32.totalorder %s20, 0
    %p62 = por %p60, %p61
    %p63 = scmp.ne.s32.totalorder %s51, %s52
    %p64 = scmp.eq.s32.totalorder %s21, 1
    %p65 = por %p63, %p64
    %p67 = scmp.ne.s32.totalorder %s52, %s66
    %p68 = scmp.eq.s32.totalorder %s21, 0
    %p69 = por %p67, %p68
    %s71 = sadd.s32 %s70, 1
    %p74 = scmp.eq.s32.totalorder %s15, 1
    %p75 = scmp.ne.s32.totalorder %s70, %s72
    %p76 = scmp.eq.s32.totalorder %s15, 0
    %p77 = por %p75, %p76
    %p78 = scmp.ne.s32.totalorder %s70, %s72
    %p79 = scmp.eq.s32.totalorder %s20, 1
    %p80 = por %p78, %p79
    %p81 = scmp.ne.s32.totalorder %s72, %s73
    %p82 = scmp.eq.s32.totalorder %s20, 0
    %p83 = por %p81, %p82
    %p84 = scmp.ne.s32.totalorder %s72, %s73
    %p85 = scmp.eq.s32.totalorder %s21, 1
    %p86 = por %p84, %p85
    %p88 = scmp.ne.s32.totalorder %s73, %s87
    %p89 = scmp.eq.s32.totalorder %s21, 0
    %p90 = por %p88, %p89
    %s92 = sadd.s32 %s91, 1
    %p95 = scmp.eq.s32.totalorder %s15, 1
    %p96 = scmp.ne.s32.totalorder %s91, %s93
    %p97 = scmp.eq.s32.totalorder %s15, 0
    %p98 = por %p96, %p97
    %p99 = scmp.ne.s32.totalorder %s91, %s93
    %p100 = scmp.eq.s32.totalorder %s20, 1
    %p101 = por %p99, %p100
    %p102 = scmp.ne.s32.totalorder %s93, %s94
    %p103 = scmp.eq.s32.totalorder %s20, 0
    %p104 = por %p102, %p103
    %p105 = scmp.ne.s32.totalorder %s93, %s94
    %p106 = scmp.eq.s32.totalorder %s21, 1
    %p107 = por %p105, %p106
    %p109 = scmp.ne.s32.totalorder %s94, %s108
    %p110 = scmp.eq.s32.totalorder %s21, 0
    %p111 = por %p109, %p110
    %s113 = sadd.s32 %s112, 1
    %p116 = scmp.eq.s32.totalorder %s15, 1
    %p117 = scmp.ne.s32.totalorder %s112, %s114
    %p118 = scmp.eq.s32.totalorder %s15, 0
    %p119 = por %p117, %p118
    %p120 = scmp.ne.s32.totalorder %s112, %s114
    %p121 = scmp.eq.s32.totalorder %s20, 1
    %p122 = por %p120, %p121
    %p123 = scmp.ne.s32.totalorder %s114, %s115
    %p124 = scmp.eq.s32.totalorder %s20, 0
    %p125 = por %p123, %p124
    %p126 = scmp.ne.s32.totalorder %s114, %s115
    %p127 = scmp.eq.s32.totalorder %s21, 1
    %p128 = por %p126, %p127
    %p130 = scmp.ne.s32.totalorder %s115, %s129
    %p131 = scmp.eq.s32.totalorder %s21, 0
    %p132 = por %p130, %p131
    %s134 = sadd.s32 %s133, 1
    %p137 = scmp.eq.s32.totalorder %s15, 1
    %p138 = scmp.ne.s32.totalorder %s133, %s135
    %p139 = scmp.eq.s32.totalorder %s15, 0
    %p140 = por %p138, %p139
    %p141 = scmp.ne.s32.totalorder %s133, %s135
    %p142 = scmp.eq.s32.totalorder %s20, 1
    %p143 = por %p141, %p142
    %p144 = scmp.ne.s32.totalorder %s135, %s136
    %p145 = scmp.eq.s32.totalorder %s20, 0
    %p146 = por %p144, %p145
    %p147 = scmp.ne.s32.totalorder %s135, %s136
    %p148 = scmp.eq.s32.totalorder %s21, 1
    %p149 = por %p147, %p148
    %p151 = scmp.ne.s32.totalorder %s136, %s150
    %p152 = scmp.eq.s32.totalorder %s21, 0
    %p153 = por %p151, %p152
    %s155 = sadd.s32 %s154, 1
    %p158 = scmp.eq.s32.totalorder %s15, 1
    %p159 = scmp.ne.s32.totalorder %s154, %s156
    %p160 = scmp.eq.s32.totalorder %s15, 0
    %p161 = por %p159, %p160
    %p162 = scmp.ne.s32.totalorder %s154, %s156
    %p163 = scmp.eq.s32.totalorder %s20, 1
    %p164 = por %p162, %p163
    %p165 = scmp.ne.s32.totalorder %s156, %s157
    %p166 = scmp.eq.s32.totalorder %s20, 0
    %p167 = por %p165, %p166
    %p168 = scmp.ne.s32.totalorder %s156, %s157
    %p169 = scmp.eq.s32.totalorder %s21, 1
    %p170 = por %p168, %p169
    %p172 = scmp.ne.s32.totalorder %s157, %s171
    %p173 = scmp.eq.s32.totalorder %s21, 0
    %p174 = por %p172, %p173
    %s176 = sadd.s32 %s175, 1
    %p179 = scmp.eq.s32.totalorder %s15, 1
    %p180 = scmp.ne.s32.totalorder %s175, %s177
    %p181 = scmp.eq.s32.totalorder %s15, 0
    %p182 = por %p180, %p181
    %p183 = scmp.ne.s32.totalorder %s175, %s177
    %p184 = scmp.eq.s32.totalorder %s20, 1
    %p185 = por %p183, %p184
    %p186 = scmp.ne.s32.totalorder %s177, %s178
    %p187 = scmp.eq.s32.totalorder %s20, 0
    %p188 = por %p186, %p187
    %p189 = scmp.ne.s32.totalorder %s177, %s178
    %p190 = scmp.eq.s32.totalorder %s21, 1
    %p191 = por %p189, %p190
    %p193 = scmp.ne.s32.totalorder %s178, %s192
    %p194 = scmp.eq.s32.totalorder %s21, 0
    %p195 = por %p193, %p194
    %s197 = sadd.s32 %s196, 1
    %p200 = scmp.eq.s32.totalorder %s15, 1
    %p201 = scmp.ne.s32.totalorder %s196, %s198
    %p202 = scmp.eq.s32.totalorder %s15, 0
    %p203 = por %p201, %p202
    %p204 = scmp.ne.s32.totalorder %s196, %s198
    %p205 = scmp.eq.s32.totalorder %s20, 1
    %p206 = por %p204, %p205
    %p207 = scmp.ne.s32.totalorder %s198, %s199
    %p208 = scmp.eq.s32.totalorder %s20, 0
    %p209 = por %p207, %p208
    %p210 = scmp.ne.s32.totalorder %s198, %s199
    %p211 = scmp.eq.s32.totalorder %s21, 1
    %p212 = por %p210, %p211
    %p214 = scmp.ne.s32.totalorder %s199, %s213
    %p215 = scmp.eq.s32.totalorder %s21, 0
    %p216 = por %p214, %p215
    %s217 = ssub.s32 %s15, %s22
    %p218 = scmp.eq.s32.totalorder %s217, 0
    %s220 = sadd.s32 %s219, 1
    %s221 = scalar_select %p218, %s219, %s220
    %p224 = pneg %p218
    %p225 = scmp.eq.s32.totalorder %s15, 1
    %p226 = por %p224, %p225
    %p227 = scmp.ne.s32.totalorder %s219, %s222
    %p228 = scmp.eq.s32.totalorder %s15, 0
    %p229 = por %p227, %p228
    %p230 = scmp.ne.s32.totalorder %s219, %s222
    %p231 = scmp.eq.s32.totalorder %s20, 1
    %p232 = por %p230, %p231
    %p233 = scmp.ne.s32.totalorder %s222, %s223
    %p234 = scmp.eq.s32.totalorder %s20, 0
    %p235 = por %p233, %p234
    %p236 = scmp.ne.s32.totalorder %s222, %s223
    %p237 = scmp.eq.s32.totalorder %s21, 1
    %p238 = por %p236, %p237
    %p240 = scmp.ne.s32.totalorder %s223, %s239
    %p241 = scmp.eq.s32.totalorder %s21, 0
    %p242 = por %p240, %p241
    %p243 = scmp.le.s32.totalorder 1, %s15
    %p244 = scmp.lt.s32.totalorder %s15, 3
    %p245 = pnand %p243, %p244
    %p246 = pneg %p245
    // Predicated region
    $region9: #{conv_autoencoder_forward.1} parent=5 // pred_check
      _
    $region10: #{conv_autoencoder_forward.1} parent=5 // pred_check_branch
      %248 = sbr.rel (%p245) target = $region12
    $region11: #{conv_autoencoder_forward.1} parent=5 // pred_region
      %s249 = ssub.s32 %s15, 1
      // Predicated region
      $region13: #{conv_autoencoder_forward.1} parent=11 // pred_check
        %p250 = pneg %p62
      $region14: #{conv_autoencoder_forward.1} parent=11 // pred_check_branch
        %252 = sbr.rel (%p250) target = $region16
      $region15: #{conv_autoencoder_forward.1} parent=11 // pred_region
        _
      $region16: #{conv_autoencoder_forward.1} parent=11 // pred_fallthru
        _
      // Predicated region
      $region17: #{conv_autoencoder_forward.1} parent=11 // pred_check
        %p253 = pneg %p83
      $region18: #{conv_autoencoder_forward.1} parent=11 // pred_check_branch
        %255 = sbr.rel (%p253) target = $region20
      $region19: #{conv_autoencoder_forward.1} parent=11 // pred_region
        _
      $region20: #{conv_autoencoder_forward.1} parent=11 // pred_fallthru
        _
      // Predicated region
      $region21: #{conv_autoencoder_forward.1} parent=11 // pred_check
        %p256 = pneg %p104
      $region22: #{conv_autoencoder_forward.1} parent=11 // pred_check_branch
        %258 = sbr.rel (%p256) target = $region24
      $region23: #{conv_autoencoder_forward.1} parent=11 // pred_region
        _
      $region24: #{conv_autoencoder_forward.1} parent=11 // pred_fallthru
        _
      // Predicated region
      $region25: #{conv_autoencoder_forward.1} parent=11 // pred_check
        %p259 = pneg %p125
      $region26: #{conv_autoencoder_forward.1} parent=11 // pred_check_branch
        %261 = sbr.rel (%p259) target = $region28
      $region27: #{conv_autoencoder_forward.1} parent=11 // pred_region
        _
      $region28: #{conv_autoencoder_forward.1} parent=11 // pred_fallthru
        _
      // Predicated region
      $region29: #{conv_autoencoder_forward.1} parent=11 // pred_check
        %p262 = pneg %p146
      $region30: #{conv_autoencoder_forward.1} parent=11 // pred_check_branch
        %264 = sbr.rel (%p262) target = $region32
      $region31: #{conv_autoencoder_forward.1} parent=11 // pred_region
        _
      $region32: #{conv_autoencoder_forward.1} parent=11 // pred_fallthru
        _
      // Predicated region
      $region33: #{conv_autoencoder_forward.1} parent=11 // pred_check
        %p265 = pneg %p167
      $region34: #{conv_autoencoder_forward.1} parent=11 // pred_check_branch
        %267 = sbr.rel (%p265) target = $region36
      $region35: #{conv_autoencoder_forward.1} parent=11 // pred_region
        _
      $region36: #{conv_autoencoder_forward.1} parent=11 // pred_fallthru
        _
      // Predicated region
      $region37: #{conv_autoencoder_forward.1} parent=11 // pred_check
        %p268 = pneg %p188
      $region38: #{conv_autoencoder_forward.1} parent=11 // pred_check_branch
        %270 = sbr.rel (%p268) target = $region40
      $region39: #{conv_autoencoder_forward.1} parent=11 // pred_region
        _
      $region40: #{conv_autoencoder_forward.1} parent=11 // pred_fallthru
        _
      // Predicated region
      $region41: #{conv_autoencoder_forward.1} parent=11 // pred_check
        %p271 = pneg %p209
      $region42: #{conv_autoencoder_forward.1} parent=11 // pred_check_branch
        %273 = sbr.rel (%p271) target = $region44
      $region43: #{conv_autoencoder_forward.1} parent=11 // pred_region
        _
      $region44: #{conv_autoencoder_forward.1} parent=11 // pred_fallthru
        _
    $region12: #{conv_autoencoder_forward.1} parent=5 // pred_fallthru
      _
    %p274 = scmp.lt.s32.totalorder %s15, 2
    // Predicated region
    $region45: #{conv_autoencoder_forward.1} parent=5 // pred_check
      %p275 = pneg %p274
    $region46: #{conv_autoencoder_forward.1} parent=5 // pred_check_branch
      %277 = sbr.rel (%p275) target = $region48
    $region47: #{conv_autoencoder_forward.1} parent=5 // pred_region
      // Predicated region
      $region49: #{conv_autoencoder_forward.1} parent=47 // pred_check
        %p278 = pneg %p35
      $region50: #{conv_autoencoder_forward.1} parent=47 // pred_check_branch
        %280 = sbr.rel (%p278) target = $region52
      $region51: #{conv_autoencoder_forward.1} parent=47 // pred_region
        %p281 = scmp.lt.s32.totalorder %s15, 1
        %s282 = scalar_select %p281, %s15, 1
        %s283 = smul.addr %s282, 4
        %s284 = smul.addr %s283, 4
        %s285 = scalar_lea.vmem %s0, %s284
      $region52: #{conv_autoencoder_forward.1} parent=47 // pred_fallthru
        _
    $region48: #{conv_autoencoder_forward.1} parent=5 // pred_fallthru
      _
    %p286 = scmp.le.s32.totalorder 1, %s15
    %p287 = scmp.lt.s32.totalorder %s15, 3
    %p288 = pnand %p286, %p287
    %p289 = pneg %p288
    // Predicated region
    $region53: #{conv_autoencoder_forward.1} parent=5 // pred_check
      _
    $region54: #{conv_autoencoder_forward.1} parent=5 // pred_check_branch
      %291 = sbr.rel (%p288) target = $region56
    $region55: #{conv_autoencoder_forward.1} parent=5 // pred_region
      %s292 = ssub.s32 %s15, 1
      %p293 = scmp.lt.s32.totalorder %s20, 1
      %s294 = scalar_select %p293, %s20, 1
      %s295 = smul.addr %s294, 4
      %s296 = smul.addr %s295, 4
      %s297 = scalar_lea.vmem %s0, %s296
      %p298 = pneg %p41
      %p299 = pneg %p38
      %p300 = pneg %p62
      %p301 = pneg %p59
      %p302 = pneg %p83
      %p303 = pneg %p80
      %p304 = pneg %p104
      %p305 = pneg %p101
      %p306 = pneg %p125
      %p307 = pneg %p122
      %p308 = pneg %p146
      %p309 = pneg %p143
      %p310 = pneg %p167
      %p311 = pneg %p164
      %p312 = pneg %p188
      %p313 = pneg %p185
      %p314 = pneg %p209
      %p315 = pneg %p206
      %p316 = pneg %p235
      %p317 = pneg %p232
      %p318 = scmp.lt.s32.totalorder %s20, 1
      %s319 = scalar_select %p318, %s20, 1
      %s320 = smul.addr %s319, 8
      %s321 = scalar_lea.vmem %s9, %s320
      %p322 = scmp.lt.s32.totalorder %s20, 1
      %s323 = scalar_select %p322, %s20, 1
      %s324 = smul.addr %s323, 4
      %s325 = smul.addr %s324, 4
      %s326 = scalar_lea.vmem %s0, %s325
      %p327 = scmp.lt.s32.totalorder %s20, 1
      %s328 = scalar_select %p327, %s20, 1
      %s329 = smul.addr %s328, 8
      %s330 = scalar_lea.vmem %s9, %s329
      %v332 = vld [vmem:[%s326] sm:$0x7]
      %s333 = scalar_lea.vmem %s326, 4
      %v334 = vld [vmem:[%s333] sm:$0x7]
      %s335 = scalar_lea.vmem %s326, 8
      %v336 = vld [vmem:[%s335] sm:$0x7]
      %s337 = scalar_lea.vmem %s326, 12
      %v338 = vld [vmem:[%s337] sm:$0x7]
      %v339 = vld [vmem:[%s1] sm:$0xff]
      %v340 = vld [vmem:[%s1 + $0x8] sm:$0xff]
      %v341 = vld [vmem:[%s1 + $0x10] sm:$0xff]
      %v342 = vld [vmem:[%s1 + $0x18] sm:$0xff]
      %v343 = vld [vmem:[%s1 + $0x20] sm:$0xff]
      %v344 = vld [vmem:[%s1 + $0x28] sm:$0xff]
      %s345 = scalar_lea.vmem %s1, 48
      %v346 = vld [vmem:[%s345] sm:$0xff]
      %v347 = vld [vmem:[%s345 + $0x8] sm:$0xff]
      %v348 = vld [vmem:[%s345 + $0x10] sm:$0xff]
      %v349 = vld [vmem:[%s345 + $0x18] sm:$0xff]
      %v350 = vld [vmem:[%s345 + $0x20] sm:$0xff]
      %v351 = vld [vmem:[%s345 + $0x28] sm:$0xff]
      %s352 = scalar_lea.vmem %s1, 96
      %v353 = vld [vmem:[%s352] sm:$0xff]
      %v354 = vld [vmem:[%s352 + $0x8] sm:$0xff]
      %v355 = vld [vmem:[%s352 + $0x10] sm:$0xff]
      %v356 = vld [vmem:[%s352 + $0x18] sm:$0xff]
      %v357 = vld [vmem:[%s352 + $0x20] sm:$0xff]
      %v358 = vld [vmem:[%s352 + $0x28] sm:$0xff]
      %v359 = vld [vmem:[%s5] sm:$0x1]
      %v366 = vunpack.c.l.b16 %v346
      %v367 = vunpack.c.h.b16 %v346
      %v368 = vunpack.c.l.b16 %v347
      %v369 = vunpack.c.h.b16 %v347
      %v370 = vunpack.c.l.b16 %v348
      %v371 = vunpack.c.h.b16 %v348
      %v372 = vunpack.c.l.b16 %v349
      %v373 = vunpack.c.h.b16 %v349
      %v374 = vunpack.c.l.b16 %v350
      %v375 = vunpack.c.h.b16 %v350
      %v376 = vunpack.c.l.b16 %v351
      %v377 = vunpack.c.h.b16 %v351
      %v378 = vpack.c.b16 %v368, %v366
      %v379 = vpack.c.b16 %v369, %v367
      %v380 = vpack.c.b16 %v372, %v370
      %v381 = vpack.c.b16 %v373, %v371
      %v382 = vpack.c.b16 %v376, %v374
      %v383 = vpack.c.b16 %v377, %v375
      %vm390 = vcmask 392192
      %v392 = vsel %vm390, %v334, 0
      %394 = vmatpush.bf16.msra.mxu0 0
      %395 = vmatpush.bf16.msra.mxu0 0
      %396 = vmatpush.bf16.msra.mxu0 0
      %397 = vmatpush.bf16.msra.mxu0 0
      %398 = vmatpush.bf16.msra.mxu0 0
      %399 = vmatpush.bf16.msra.mxu0 %v382
      %400 = vmatpush.bf16.msra.mxu0 %v380
      %401 = vmatpush.bf16.msra.mxu0 %v378
      %402 = vmatmul.bf16.gmra.mxu0 %v392
      %v403 = vpop.f32.mrf.mxu0
      %v404 = vadd.f32 0.0, %v403
      %v405 = vpop.f32.mrf.mxu0
      %406 = vdwg.mxu0
      %407 = vmatpush.bf16.msra.mxu0 0
      %408 = vmatpush.bf16.msra.mxu0 0
      %409 = vmatpush.bf16.msra.mxu0 0
      %410 = vmatpush.bf16.msra.mxu0 0
      %411 = vmatpush.bf16.msra.mxu0 0
      %412 = vmatpush.bf16.msra.mxu0 %v383
      %413 = vmatpush.bf16.msra.mxu0 %v381
      %414 = vmatpush.bf16.msra.mxu0 %v379
      %415 = vmatmul.bf16.gmra.mxu0 %v392
      %v416 = vpop.f32.mrf.mxu0
      %v417 = vadd.f32 0.0, %v416
      %v418 = vpop.f32.mrf.mxu0
      %419 = vdwg.mxu0
      %v426 = vunpack.c.l.b16 %v339
      %v427 = vunpack.c.h.b16 %v339
      %v428 = vunpack.c.l.b16 %v340
      %v429 = vunpack.c.h.b16 %v340
      %v430 = vunpack.c.l.b16 %v341
      %v431 = vunpack.c.h.b16 %v341
      %v432 = vunpack.c.l.b16 %v342
      %v433 = vunpack.c.h.b16 %v342
      %v434 = vunpack.c.l.b16 %v343
      %v435 = vunpack.c.h.b16 %v343
      %v436 = vunpack.c.l.b16 %v344
      %v437 = vunpack.c.h.b16 %v344
      %v438 = vpack.c.b16 %v428, %v426
      %v439 = vpack.c.b16 %v429, %v427
      %v440 = vpack.c.b16 %v432, %v430
      %v441 = vpack.c.b16 %v433, %v431
      %v442 = vpack.c.b16 %v436, %v434
      %v443 = vpack.c.b16 %v437, %v435
      %v451 = vsel %vm390, %v332, 0
      %453 = vmatpush.bf16.msra.mxu0 0
      %454 = vmatpush.bf16.msra.mxu0 0
      %455 = vmatpush.bf16.msra.mxu0 0
      %456 = vmatpush.bf16.msra.mxu0 0
      %457 = vmatpush.bf16.msra.mxu0 0
      %458 = vmatpush.bf16.msra.mxu0 %v442
      %459 = vmatpush.bf16.msra.mxu0 %v440
      %460 = vmatpush.bf16.msra.mxu0 %v438
      %461 = vmatmul.bf16.gmra.mxu0 %v451
      %v462 = vpop.f32.mrf.mxu0
      %v463 = vadd.f32 %v404, %v462
      %v464 = vpop.f32.mrf.mxu0
      %465 = vdwg.mxu0
      %466 = vmatpush.bf16.msra.mxu0 0
      %467 = vmatpush.bf16.msra.mxu0 0
      %468 = vmatpush.bf16.msra.mxu0 0
      %469 = vmatpush.bf16.msra.mxu0 0
      %470 = vmatpush.bf16.msra.mxu0 0
      %471 = vmatpush.bf16.msra.mxu0 %v443
      %472 = vmatpush.bf16.msra.mxu0 %v441
      %473 = vmatpush.bf16.msra.mxu0 %v439
      %474 = vmatmul.bf16.gmra.mxu0 %v451
      %v475 = vpop.f32.mrf.mxu0
      %v476 = vadd.f32 %v417, %v475
      %v477 = vpop.f32.mrf.mxu0
      %478 = vdwg.mxu0
      %v485 = vunpack.c.l.b16 %v353
      %v486 = vunpack.c.h.b16 %v353
      %v487 = vunpack.c.l.b16 %v354
      %v488 = vunpack.c.h.b16 %v354
      %v489 = vunpack.c.l.b16 %v355
      %v490 = vunpack.c.h.b16 %v355
      %v491 = vunpack.c.l.b16 %v356
      %v492 = vunpack.c.h.b16 %v356
      %v493 = vunpack.c.l.b16 %v357
      %v494 = vunpack.c.h.b16 %v357
      %v495 = vunpack.c.l.b16 %v358
      %v496 = vunpack.c.h.b16 %v358
      %v497 = vpack.c.b16 %v487, %v485
      %v498 = vpack.c.b16 %v488, %v486
      %v499 = vpack.c.b16 %v491, %v489
      %v500 = vpack.c.b16 %v492, %v490
      %v501 = vpack.c.b16 %v495, %v493
      %v502 = vpack.c.b16 %v496, %v494
      %v510 = vsel %vm390, %v336, 0
      %512 = vmatpush.bf16.msra.mxu0 0
      %513 = vmatpush.bf16.msra.mxu0 0
      %514 = vmatpush.bf16.msra.mxu0 0
      %515 = vmatpush.bf16.msra.mxu0 0
      %516 = vmatpush.bf16.msra.mxu0 0
      %517 = vmatpush.bf16.msra.mxu0 %v501
      %518 = vmatpush.bf16.msra.mxu0 %v499
      %519 = vmatpush.bf16.msra.mxu0 %v497
      %520 = vmatmul.bf16.gmra.mxu0 %v510
      %v521 = vpop.f32.mrf.mxu0
      %v522 = vadd.f32 0.0, %v521
      %v523 = vpop.f32.mrf.mxu0
      %524 = vdwg.mxu0
      %525 = vmatpush.bf16.msra.mxu0 0
      %526 = vmatpush.bf16.msra.mxu0 0
      %527 = vmatpush.bf16.msra.mxu0 0
      %528 = vmatpush.bf16.msra.mxu0 0
      %529 = vmatpush.bf16.msra.mxu0 0
      %530 = vmatpush.bf16.msra.mxu0 %v502
      %531 = vmatpush.bf16.msra.mxu0 %v500
      %532 = vmatpush.bf16.msra.mxu0 %v498
      %533 = vmatmul.bf16.gmra.mxu0 %v510
      %v534 = vpop.f32.mrf.mxu0
      %v535 = vadd.f32 0.0, %v534
      %v536 = vpop.f32.mrf.mxu0
      %537 = vdwg.mxu0
      %v538 = vadd.f32 %v463, %v522
      %v539 = vadd.f32 %v476, %v535
      %540 = vmatpush.bf16.msra.mxu0 0
      %541 = vmatpush.bf16.msra.mxu0 0
      %542 = vmatpush.bf16.msra.mxu0 0
      %543 = vmatpush.bf16.msra.mxu0 0
      %544 = vmatpush.bf16.msra.mxu0 0
      %545 = vmatpush.bf16.msra.mxu0 %v382
      %546 = vmatpush.bf16.msra.mxu0 %v380
      %547 = vmatpush.bf16.msra.mxu0 %v378
      %548 = vmatmul.bf16.gmra.mxu0 %v510
      %v549 = vpop.f32.mrf.mxu0
      %v550 = vadd.f32 0.0, %v549
      %v551 = vpop.f32.mrf.mxu0
      %552 = vdwg.mxu0
      %553 = vmatpush.bf16.msra.mxu0 0
      %554 = vmatpush.bf16.msra.mxu0 0
      %555 = vmatpush.bf16.msra.mxu0 0
      %556 = vmatpush.bf16.msra.mxu0 0
      %557 = vmatpush.bf16.msra.mxu0 0
      %558 = vmatpush.bf16.msra.mxu0 %v383
      %559 = vmatpush.bf16.msra.mxu0 %v381
      %560 = vmatpush.bf16.msra.mxu0 %v379
      %561 = vmatmul.bf16.gmra.mxu0 %v510
      %v562 = vpop.f32.mrf.mxu0
      %v563 = vadd.f32 0.0, %v562
      %v564 = vpop.f32.mrf.mxu0
      %565 = vdwg.mxu0
      %566 = vmatpush.bf16.msra.mxu0 0
      %567 = vmatpush.bf16.msra.mxu0 0
      %568 = vmatpush.bf16.msra.mxu0 0
      %569 = vmatpush.bf16.msra.mxu0 0
      %570 = vmatpush.bf16.msra.mxu0 0
      %571 = vmatpush.bf16.msra.mxu0 %v442
      %572 = vmatpush.bf16.msra.mxu0 %v440
      %573 = vmatpush.bf16.msra.mxu0 %v438
      %574 = vmatmul.bf16.gmra.mxu0 %v392
      %v575 = vpop.f32.mrf.mxu0
      %v576 = vadd.f32 %v550, %v575
      %v577 = vpop.f32.mrf.mxu0
      %578 = vdwg.mxu0
      %579 = vmatpush.bf16.msra.mxu0 0
      %580 = vmatpush.bf16.msra.mxu0 0
      %581 = vmatpush.bf16.msra.mxu0 0
      %582 = vmatpush.bf16.msra.mxu0 0
      %583 = vmatpush.bf16.msra.mxu0 0
      %584 = vmatpush.bf16.msra.mxu0 %v443
      %585 = vmatpush.bf16.msra.mxu0 %v441
      %586 = vmatpush.bf16.msra.mxu0 %v439
      %587 = vmatmul.bf16.gmra.mxu0 %v392
      %v588 = vpop.f32.mrf.mxu0
      %v589 = vadd.f32 %v563, %v588
      %v590 = vpop.f32.mrf.mxu0
      %591 = vdwg.mxu0
      %v593 = vsel %vm390, %v338, 0
      %595 = vmatpush.bf16.msra.mxu0 0
      %596 = vmatpush.bf16.msra.mxu0 0
      %597 = vmatpush.bf16.msra.mxu0 0
      %598 = vmatpush.bf16.msra.mxu0 0
      %599 = vmatpush.bf16.msra.mxu0 0
      %600 = vmatpush.bf16.msra.mxu0 %v501
      %601 = vmatpush.bf16.msra.mxu0 %v499
      %602 = vmatpush.bf16.msra.mxu0 %v497
      %603 = vmatmul.bf16.gmra.mxu0 %v593
      %v604 = vpop.f32.mrf.mxu0
      %v605 = vadd.f32 0.0, %v604
      %v606 = vpop.f32.mrf.mxu0
      %607 = vdwg.mxu0
      %608 = vmatpush.bf16.msra.mxu0 0
      %609 = vmatpush.bf16.msra.mxu0 0
      %610 = vmatpush.bf16.msra.mxu0 0
      %611 = vmatpush.bf16.msra.mxu0 0
      %612 = vmatpush.bf16.msra.mxu0 0
      %613 = vmatpush.bf16.msra.mxu0 %v502
      %614 = vmatpush.bf16.msra.mxu0 %v500
      %615 = vmatpush.bf16.msra.mxu0 %v498
      %616 = vmatmul.bf16.gmra.mxu0 %v593
      %v617 = vpop.f32.mrf.mxu0
      %v618 = vadd.f32 0.0, %v617
      %v619 = vpop.f32.mrf.mxu0
      %620 = vdwg.mxu0
      %v621 = vadd.f32 %v576, %v605
      %v622 = vadd.f32 %v589, %v618
      %v623 = vmax.f32 %v538, %v621
      %v624 = vmax.f32 %v539, %v622
      %v625 = vmax.f32 %v623, %v624
      %v627 = vperm.slane %v359, 0
      %v629 = vadd.f32 %v625, %v627
      %v630 = vmax.f32 %v629, 0.0
      %v631 = vpack.c.bf16 %v630, %v630
      %632 = vmatpush.bf16.msra.mxu0 0
      %633 = vmatpush.bf16.msra.mxu0 0
      %634 = vmatpush.bf16.msra.mxu0 0
      %635 = vmatpush.bf16.msra.mxu0 0
      %636 = vmatpush.bf16.msra.mxu0 0
      %637 = vmatpush.bf16.msra.mxu0 %v382
      %638 = vmatpush.bf16.msra.mxu0 %v380
      %639 = vmatpush.bf16.msra.mxu0 %v378
      %640 = vmatmul.bf16.gmra.mxu0 %v593
      %v641 = vpop.f32.mrf.mxu0
      %v642 = vadd.f32 0.0, %v641
      %v643 = vpop.f32.mrf.mxu0
      %644 = vdwg.mxu0
      %645 = vmatpush.bf16.msra.mxu0 0
      %646 = vmatpush.bf16.msra.mxu0 0
      %647 = vmatpush.bf16.msra.mxu0 0
      %648 = vmatpush.bf16.msra.mxu0 0
      %649 = vmatpush.bf16.msra.mxu0 0
      %650 = vmatpush.bf16.msra.mxu0 %v383
      %651 = vmatpush.bf16.msra.mxu0 %v381
      %652 = vmatpush.bf16.msra.mxu0 %v379
      %653 = vmatmul.bf16.gmra.mxu0 %v593
      %v654 = vpop.f32.mrf.mxu0
      %v655 = vadd.f32 0.0, %v654
      %v656 = vpop.f32.mrf.mxu0
      %657 = vdwg.mxu0
      %658 = vmatpush.bf16.msra.mxu0 0
      %659 = vmatpush.bf16.msra.mxu0 0
      %660 = vmatpush.bf16.msra.mxu0 0
      %661 = vmatpush.bf16.msra.mxu0 0
      %662 = vmatpush.bf16.msra.mxu0 0
      %663 = vmatpush.bf16.msra.mxu0 %v442
      %664 = vmatpush.bf16.msra.mxu0 %v440
      %665 = vmatpush.bf16.msra.mxu0 %v438
      %666 = vmatmul.bf16.gmra.mxu0 %v510
      %v667 = vpop.f32.mrf.mxu0
      %v668 = vadd.f32 %v642, %v667
      %v669 = vpop.f32.mrf.mxu0
      %670 = vdwg.mxu0
      %671 = vmatpush.bf16.msra.mxu0 0
      %672 = vmatpush.bf16.msra.mxu0 0
      %673 = vmatpush.bf16.msra.mxu0 0
      %674 = vmatpush.bf16.msra.mxu0 0
      %675 = vmatpush.bf16.msra.mxu0 0
      %676 = vmatpush.bf16.msra.mxu0 %v443
      %677 = vmatpush.bf16.msra.mxu0 %v441
      %678 = vmatpush.bf16.msra.mxu0 %v439
      %679 = vmatmul.bf16.gmra.mxu0 %v510
      %v680 = vpop.f32.mrf.mxu0
      %v681 = vadd.f32 %v655, %v680
      %v682 = vpop.f32.mrf.mxu0
      %683 = vdwg.mxu0
      %v685 = vunpack.c.l.b16 %v332
      %v686 = vpack.c.b16 %v685, %v685
      %v688 = vshrl.u32 %v686, 16
      %v690 = vshll.u32 %v686, 16
      %v692 = vrot.slane %v690, 1
      %v693 = vor.u32 %v688, %v692
      %v695 = vsel %vm390, %v693, 0
      %697 = vmatpush.bf16.msra.mxu0 0
      %698 = vmatpush.bf16.msra.mxu0 0
      %699 = vmatpush.bf16.msra.mxu0 0
      %700 = vmatpush.bf16.msra.mxu0 0
      %701 = vmatpush.bf16.msra.mxu0 0
      %702 = vmatpush.bf16.msra.mxu0 %v501
      %703 = vmatpush.bf16.msra.mxu0 %v499
      %704 = vmatpush.bf16.msra.mxu0 %v497
      %705 = vmatmul.bf16.gmra.mxu0 %v695
      %v706 = vpop.f32.mrf.mxu0
      %v707 = vadd.f32 0.0, %v706
      %v708 = vpop.f32.mrf.mxu0
      %709 = vdwg.mxu0
      %710 = vmatpush.bf16.msra.mxu0 0
      %711 = vmatpush.bf16.msra.mxu0 0
      %712 = vmatpush.bf16.msra.mxu0 0
      %713 = vmatpush.bf16.msra.mxu0 0
      %714 = vmatpush.bf16.msra.mxu0 0
      %715 = vmatpush.bf16.msra.mxu0 %v502
      %716 = vmatpush.bf16.msra.mxu0 %v500
      %717 = vmatpush.bf16.msra.mxu0 %v498
      %718 = vmatmul.bf16.gmra.mxu0 %v695
      %v719 = vpop.f32.mrf.mxu0
      %v720 = vadd.f32 0.0, %v719
      %v721 = vpop.f32.mrf.mxu0
      %722 = vdwg.mxu0
      %v723 = vadd.f32 %v668, %v707
      %v724 = vadd.f32 %v681, %v720
      %725 = vmatpush.bf16.msra.mxu0 0
      %726 = vmatpush.bf16.msra.mxu0 0
      %727 = vmatpush.bf16.msra.mxu0 0
      %728 = vmatpush.bf16.msra.mxu0 0
      %729 = vmatpush.bf16.msra.mxu0 0
      %730 = vmatpush.bf16.msra.mxu0 %v382
      %731 = vmatpush.bf16.msra.mxu0 %v380
      %732 = vmatpush.bf16.msra.mxu0 %v378
      %733 = vmatmul.bf16.gmra.mxu0 %v695
      %v734 = vpop.f32.mrf.mxu0
      %v735 = vadd.f32 0.0, %v734
      %v736 = vpop.f32.mrf.mxu0
      %737 = vdwg.mxu0
      %738 = vmatpush.bf16.msra.mxu0 0
      %739 = vmatpush.bf16.msra.mxu0 0
      %740 = vmatpush.bf16.msra.mxu0 0
      %741 = vmatpush.bf16.msra.mxu0 0
      %742 = vmatpush.bf16.msra.mxu0 0
      %743 = vmatpush.bf16.msra.mxu0 %v383
      %744 = vmatpush.bf16.msra.mxu0 %v381
      %745 = vmatpush.bf16.msra.mxu0 %v379
      %746 = vmatmul.bf16.gmra.mxu0 %v695
      %v747 = vpop.f32.mrf.mxu0
      %v748 = vadd.f32 0.0, %v747
      %v749 = vpop.f32.mrf.mxu0
      %750 = vdwg.mxu0
      %751 = vmatpush.bf16.msra.mxu0 0
      %752 = vmatpush.bf16.msra.mxu0 0
      %753 = vmatpush.bf16.msra.mxu0 0
      %754 = vmatpush.bf16.msra.mxu0 0
      %755 = vmatpush.bf16.msra.mxu0 0
      %756 = vmatpush.bf16.msra.mxu0 %v442
      %757 = vmatpush.bf16.msra.mxu0 %v440
      %758 = vmatpush.bf16.msra.mxu0 %v438
      %759 = vmatmul.bf16.gmra.mxu0 %v593
      %v760 = vpop.f32.mrf.mxu0
      %v761 = vadd.f32 %v735, %v760
      %v762 = vpop.f32.mrf.mxu0
      %763 = vdwg.mxu0
      %764 = vmatpush.bf16.msra.mxu0 0
      %765 = vmatpush.bf16.msra.mxu0 0
      %766 = vmatpush.bf16.msra.mxu0 0
      %767 = vmatpush.bf16.msra.mxu0 0
      %768 = vmatpush.bf16.msra.mxu0 0
      %769 = vmatpush.bf16.msra.mxu0 %v443
      %770 = vmatpush.bf16.msra.mxu0 %v441
      %771 = vmatpush.bf16.msra.mxu0 %v439
      %772 = vmatmul.bf16.gmra.mxu0 %v593
      %v773 = vpop.f32.mrf.mxu0
      %v774 = vadd.f32 %v748, %v773
      %v775 = vpop.f32.mrf.mxu0
      %776 = vdwg.mxu0
      %v778 = vunpack.c.l.b16 %v334
      %v779 = vpack.c.b16 %v778, %v778
      %v781 = vshrl.u32 %v779, 16
      %v783 = vshll.u32 %v779, 16
      %v785 = vrot.slane %v783, 1
      %v786 = vor.u32 %v781, %v785
      %v788 = vsel %vm390, %v786, 0
      %790 = vmatpush.bf16.msra.mxu0 0
      %791 = vmatpush.bf16.msra.mxu0 0
      %792 = vmatpush.bf16.msra.mxu0 0
      %793 = vmatpush.bf16.msra.mxu0 0
      %794 = vmatpush.bf16.msra.mxu0 0
      %795 = vmatpush.bf16.msra.mxu0 %v501
      %796 = vmatpush.bf16.msra.mxu0 %v499
      %797 = vmatpush.bf16.msra.mxu0 %v497
      %798 = vmatmul.bf16.gmra.mxu0 %v788
      %v799 = vpop.f32.mrf.mxu0
      %v800 = vadd.f32 0.0, %v799
      %v801 = vpop.f32.mrf.mxu0
      %802 = vdwg.mxu0
      %803 = vmatpush.bf16.msra.mxu0 0
      %804 = vmatpush.bf16.msra.mxu0 0
      %805 = vmatpush.bf16.msra.mxu0 0
      %806 = vmatpush.bf16.msra.mxu0 0
      %807 = vmatpush.bf16.msra.mxu0 0
      %808 = vmatpush.bf16.msra.mxu0 %v502
      %809 = vmatpush.bf16.msra.mxu0 %v500
      %810 = vmatpush.bf16.msra.mxu0 %v498
      %811 = vmatmul.bf16.gmra.mxu0 %v788
      %v812 = vpop.f32.mrf.mxu0
      %v813 = vadd.f32 0.0, %v812
      %v814 = vpop.f32.mrf.mxu0
      %815 = vdwg.mxu0
      %v816 = vadd.f32 %v761, %v800
      %v817 = vadd.f32 %v774, %v813
      %v818 = vmax.f32 %v723, %v816
      %v819 = vmax.f32 %v724, %v817
      %v820 = vmax.f32 %v818, %v819
      %v821 = vadd.f32 %v820, %v627
      %v822 = vmax.f32 %v821, 0.0
      %v823 = vpack.c.bf16 %v822, %v822
      %v825 = vunpack.c.l.b16 %v823
      %v826 = vpack.c.b16 %v825, %v825
      %v828 = vshrl.u32 %v826, 16
      %v830 = vrot.slane %v828, 7
      %v831 = vshll.u32 %v826, 16
      %v833 = vor.u32 %v830, %v831
      %vm835 = vcmask 1040384
      %vm836 = vsmask.f32 256
      %vm837 = vmand %vm835, %vm836
      %v838 = vsel %vm837, 0, %v833
      %vm839 = vcmask 1041408
      %v842 = vsel %vm839, %v631, 0
      %v844 = vld [vmem:[%s2] sm:$0xf]
      %v845 = vld [vmem:[%s2 + $0x4] sm:$0xf]
      %v846 = vld [vmem:[%s2 + $0x8] sm:$0xf]
      %v847 = vld [vmem:[%s2 + $0xc] sm:$0xf]
      %v848 = vld [vmem:[%s2 + $0x10] sm:$0xf]
      %v849 = vld [vmem:[%s2 + $0x14] sm:$0xf]
      %v850 = vld [vmem:[%s2 + $0x18] sm:$0xf]
      %v851 = vld [vmem:[%s2 + $0x1c] sm:$0xf]
      %v852 = vld [vmem:[%s2 + $0x20] sm:$0xf]
      %v853 = vld [vmem:[%s2 + $0x24] sm:$0xf]
      %v854 = vld [vmem:[%s2 + $0x28] sm:$0xf]
      %v855 = vld [vmem:[%s2 + $0x2c] sm:$0xf]
      %v856 = vld [vmem:[%s2 + $0x30] sm:$0xf]
      %v857 = vld [vmem:[%s2 + $0x34] sm:$0xf]
      %v858 = vld [vmem:[%s2 + $0x38] sm:$0xf]
      %v859 = vld [vmem:[%s2 + $0x3c] sm:$0xf]
      %s860 = scalar_lea.vmem %s2, 64
      %v861 = vld [vmem:[%s860] sm:$0xf]
      %v862 = vld [vmem:[%s860 + $0x4] sm:$0xf]
      %v863 = vld [vmem:[%s860 + $0x8] sm:$0xf]
      %v864 = vld [vmem:[%s860 + $0xc] sm:$0xf]
      %v865 = vld [vmem:[%s860 + $0x10] sm:$0xf]
      %v866 = vld [vmem:[%s860 + $0x14] sm:$0xf]
      %v867 = vld [vmem:[%s860 + $0x18] sm:$0xf]
      %v868 = vld [vmem:[%s860 + $0x1c] sm:$0xf]
      %v869 = vld [vmem:[%s860 + $0x20] sm:$0xf]
      %v870 = vld [vmem:[%s860 + $0x24] sm:$0xf]
      %v871 = vld [vmem:[%s860 + $0x28] sm:$0xf]
      %v872 = vld [vmem:[%s860 + $0x2c] sm:$0xf]
      %v873 = vld [vmem:[%s860 + $0x30] sm:$0xf]
      %v874 = vld [vmem:[%s860 + $0x34] sm:$0xf]
      %v875 = vld [vmem:[%s860 + $0x38] sm:$0xf]
      %v876 = vld [vmem:[%s860 + $0x3c] sm:$0xf]
      %s877 = scalar_lea.vmem %s2, 128
      %v878 = vld [vmem:[%s877] sm:$0xf]
      %v879 = vld [vmem:[%s877 + $0x4] sm:$0xf]
      %v880 = vld [vmem:[%s877 + $0x8] sm:$0xf]
      %v881 = vld [vmem:[%s877 + $0xc] sm:$0xf]
      %v882 = vld [vmem:[%s877 + $0x10] sm:$0xf]
      %v883 = vld [vmem:[%s877 + $0x14] sm:$0xf]
      %v884 = vld [vmem:[%s877 + $0x18] sm:$0xf]
      %v885 = vld [vmem:[%s877 + $0x1c] sm:$0xf]
      %v886 = vld [vmem:[%s877 + $0x20] sm:$0xf]
      %v887 = vld [vmem:[%s877 + $0x24] sm:$0xf]
      %v888 = vld [vmem:[%s877 + $0x28] sm:$0xf]
      %v889 = vld [vmem:[%s877 + $0x2c] sm:$0xf]
      %v890 = vld [vmem:[%s877 + $0x30] sm:$0xf]
      %v891 = vld [vmem:[%s877 + $0x34] sm:$0xf]
      %v892 = vld [vmem:[%s877 + $0x38] sm:$0xf]
      %v893 = vld [vmem:[%s877 + $0x3c] sm:$0xf]
      %v910 = vunpack.c.l.b16 %v861
      %v911 = vunpack.c.l.b16 %v862
      %v912 = vunpack.c.l.b16 %v863
      %v913 = vunpack.c.l.b16 %v864
      %v914 = vunpack.c.l.b16 %v865
      %v915 = vunpack.c.l.b16 %v866
      %v916 = vunpack.c.l.b16 %v867
      %v917 = vunpack.c.l.b16 %v868
      %v918 = vunpack.c.l.b16 %v869
      %v919 = vunpack.c.l.b16 %v870
      %v920 = vunpack.c.l.b16 %v871
      %v921 = vunpack.c.l.b16 %v872
      %v922 = vunpack.c.l.b16 %v873
      %v923 = vunpack.c.l.b16 %v874
      %v924 = vunpack.c.l.b16 %v875
      %v925 = vunpack.c.l.b16 %v876
      %v926 = vpack.c.b16 %v911, %v910
      %v927 = vpack.c.b16 %v913, %v912
      %v928 = vpack.c.b16 %v915, %v914
      %v929 = vpack.c.b16 %v917, %v916
      %v930 = vpack.c.b16 %v919, %v918
      %v931 = vpack.c.b16 %v921, %v920
      %v932 = vpack.c.b16 %v923, %v922
      %v933 = vpack.c.b16 %v925, %v924
      %942 = vmatpush.bf16.msra.mxu0 %v933
      %943 = vmatpush.bf16.msra.mxu0 %v932
      %944 = vmatpush.bf16.msra.mxu0 %v931
      %945 = vmatpush.bf16.msra.mxu0 %v930
      %946 = vmatpush.bf16.msra.mxu0 %v929
      %947 = vmatpush.bf16.msra.mxu0 %v928
      %948 = vmatpush.bf16.msra.mxu0 %v927
      %949 = vmatpush.bf16.msra.mxu0 %v926
      %950 = vmatmul.bf16.gmra.mxu0 %v842
      %v951 = vpop.f32.mrf.mxu0
      %v952 = vadd.f32 0.0, %v951
      %v953 = vpop.f32.mrf.mxu0
      %954 = vdwg.mxu0
      %v971 = vunpack.c.l.b16 %v844
      %v972 = vunpack.c.l.b16 %v845
      %v973 = vunpack.c.l.b16 %v846
      %v974 = vunpack.c.l.b16 %v847
      %v975 = vunpack.c.l.b16 %v848
      %v976 = vunpack.c.l.b16 %v849
      %v977 = vunpack.c.l.b16 %v850
      %v978 = vunpack.c.l.b16 %v851
      %v979 = vunpack.c.l.b16 %v852
      %v980 = vunpack.c.l.b16 %v853
      %v981 = vunpack.c.l.b16 %v854
      %v982 = vunpack.c.l.b16 %v855
      %v983 = vunpack.c.l.b16 %v856
      %v984 = vunpack.c.l.b16 %v857
      %v985 = vunpack.c.l.b16 %v858
      %v986 = vunpack.c.l.b16 %v859
      %v987 = vpack.c.b16 %v972, %v971
      %v988 = vpack.c.b16 %v974, %v973
      %v989 = vpack.c.b16 %v976, %v975
      %v990 = vpack.c.b16 %v978, %v977
      %v991 = vpack.c.b16 %v980, %v979
      %v992 = vpack.c.b16 %v982, %v981
      %v993 = vpack.c.b16 %v984, %v983
      %v994 = vpack.c.b16 %v986, %v985
      %1003 = vmatpush.bf16.msra.mxu0 %v994
      %1004 = vmatpush.bf16.msra.mxu0 %v993
      %1005 = vmatpush.bf16.msra.mxu0 %v992
      %1006 = vmatpush.bf16.msra.mxu0 %v991
      %1007 = vmatpush.bf16.msra.mxu0 %v990
      %1008 = vmatpush.bf16.msra.mxu0 %v989
      %1009 = vmatpush.bf16.msra.mxu0 %v988
      %1010 = vmatpush.bf16.msra.mxu0 %v987
      %1011 = vmatmul.bf16.gmra.mxu0 %v838
      %v1012 = vpop.f32.mrf.mxu0
      %v1013 = vadd.f32 %v952, %v1012
      %v1014 = vpop.f32.mrf.mxu0
      %1015 = vdwg.mxu0
      %v1017 = vshrl.u32 %v838, 16
      %v1019 = vshll.u32 %v838, 16
      %v1021 = vrot.slane %v1019, 1
      %v1022 = vor.u32 %v1017, %v1021
      %v1040 = vunpack.c.l.b16 %v878
      %v1041 = vunpack.c.l.b16 %v879
      %v1042 = vunpack.c.l.b16 %v880
      %v1043 = vunpack.c.l.b16 %v881
      %v1044 = vunpack.c.l.b16 %v882
      %v1045 = vunpack.c.l.b16 %v883
      %v1046 = vunpack.c.l.b16 %v884
      %v1047 = vunpack.c.l.b16 %v885
      %v1048 = vunpack.c.l.b16 %v886
      %v1049 = vunpack.c.l.b16 %v887
      %v1050 = vunpack.c.l.b16 %v888
      %v1051 = vunpack.c.l.b16 %v889
      %v1052 = vunpack.c.l.b16 %v890
      %v1053 = vunpack.c.l.b16 %v891
      %v1054 = vunpack.c.l.b16 %v892
      %v1055 = vunpack.c.l.b16 %v893
      %v1056 = vpack.c.b16 %v1041, %v1040
      %v1057 = vpack.c.b16 %v1043, %v1042
      %v1058 = vpack.c.b16 %v1045, %v1044
      %v1059 = vpack.c.b16 %v1047, %v1046
      %v1060 = vpack.c.b16 %v1049, %v1048
      %v1061 = vpack.c.b16 %v1051, %v1050
      %v1062 = vpack.c.b16 %v1053, %v1052
      %v1063 = vpack.c.b16 %v1055, %v1054
      %1072 = vmatpush.bf16.msra.mxu0 %v1063
      %1073 = vmatpush.bf16.msra.mxu0 %v1062
      %1074 = vmatpush.bf16.msra.mxu0 %v1061
      %1075 = vmatpush.bf16.msra.mxu0 %v1060
      %1076 = vmatpush.bf16.msra.mxu0 %v1059
      %1077 = vmatpush.bf16.msra.mxu0 %v1058
      %1078 = vmatpush.bf16.msra.mxu0 %v1057
      %1079 = vmatpush.bf16.msra.mxu0 %v1056
      %1080 = vmatmul.bf16.gmra.mxu0 %v1022
      %v1081 = vpop.f32.mrf.mxu0
      %v1082 = vadd.f32 0.0, %v1081
      %v1083 = vpop.f32.mrf.mxu0
      %1084 = vdwg.mxu0
      %v1085 = vadd.f32 %v1013, %v1082
      %1086 = vmatpush.bf16.msra.mxu0 %v933
      %1087 = vmatpush.bf16.msra.mxu0 %v932
      %1088 = vmatpush.bf16.msra.mxu0 %v931
      %1089 = vmatpush.bf16.msra.mxu0 %v930
      %1090 = vmatpush.bf16.msra.mxu0 %v929
      %1091 = vmatpush.bf16.msra.mxu0 %v928
      %1092 = vmatpush.bf16.msra.mxu0 %v927
      %1093 = vmatpush.bf16.msra.mxu0 %v926
      %1094 = vmatmul.bf16.gmra.mxu0 %v1022
      %v1095 = vpop.f32.mrf.mxu0
      %v1096 = vadd.f32 0.0, %v1095
      %v1097 = vpop.f32.mrf.mxu0
      %1098 = vdwg.mxu0
      %1099 = vmatpush.bf16.msra.mxu0 %v994
      %1100 = vmatpush.bf16.msra.mxu0 %v993
      %1101 = vmatpush.bf16.msra.mxu0 %v992
      %1102 = vmatpush.bf16.msra.mxu0 %v991
      %1103 = vmatpush.bf16.msra.mxu0 %v990
      %1104 = vmatpush.bf16.msra.mxu0 %v989
      %1105 = vmatpush.bf16.msra.mxu0 %v988
      %1106 = vmatpush.bf16.msra.mxu0 %v987
      %1107 = vmatmul.bf16.gmra.mxu0 %v842
      %v1108 = vpop.f32.mrf.mxu0
      %v1109 = vadd.f32 %v1096, %v1108
      %v1110 = vpop.f32.mrf.mxu0
      %1111 = vdwg.mxu0
      %v1112 = vshrl.u32 %v842, 16
      %v1114 = vshll.u32 %v842, 16
      %v1116 = vrot.slane %v1114, 1
      %v1117 = vor.u32 %v1112, %v1116
      %1119 = vmatpush.bf16.msra.mxu0 %v1063
      %1120 = vmatpush.bf16.msra.mxu0 %v1062
      %1121 = vmatpush.bf16.msra.mxu0 %v1061
      %1122 = vmatpush.bf16.msra.mxu0 %v1060
      %1123 = vmatpush.bf16.msra.mxu0 %v1059
      %1124 = vmatpush.bf16.msra.mxu0 %v1058
      %1125 = vmatpush.bf16.msra.mxu0 %v1057
      %1126 = vmatpush.bf16.msra.mxu0 %v1056
      %1127 = vmatmul.bf16.gmra.mxu0 %v1117
      %v1128 = vpop.f32.mrf.mxu0
      %v1129 = vadd.f32 0.0, %v1128
      %v1130 = vpop.f32.mrf.mxu0
      %1131 = vdwg.mxu0
      %v1132 = vadd.f32 %v1109, %v1129
      %1134 = vrot.lane.b32.xlu0 %v1085, 112
      %v1135 = vpop.permute.xlu0 %1134
      %v1137 = vmax.f32 %v1085, %v1135
      %1139 = vrot.lane.b32.xlu0 %v1132, 112
      %v1140 = vpop.permute.xlu0 %1139
      %v1142 = vmax.f32 %v1132, %v1140
      %v1143 = vmax.f32 %v1137, %v1142
      %v1144 = vld [vmem:[%s6] sm:$0x1]
      %v1146 = vperm.slane %v1144, 0
      %v1148 = vadd.f32 %v1143, %v1146
      %v1149 = vmax.f32 %v1148, 0.0
      %v1150 = vpack.c.bf16 %v1149, %v1149
      %v1151 = vld [vmem:[%s3] sm:$0xff]
      %v1152 = vld [vmem:[%s3 + $0x8] sm:$0xff]
      %v1153 = vld [vmem:[%s7] sm:$0x3]
      %v1155 = vperm.slane %v1153, 0
      %v1156 = vperm.slane %v1153, 1
      %v1161 = vunpack.c.l.b16 %v1151
      %v1162 = vunpack.c.h.b16 %v1151
      %v1163 = vunpack.c.l.b16 %v1152
      %v1164 = vunpack.c.h.b16 %v1152
      %v1165 = vpack.c.b16 %v1163, %v1161
      %v1166 = vpack.c.b16 %v1164, %v1162
      %vm1169 = vcmask 130048
      %v1171 = vsel %vm1169, %v1150, 0
      %1173 = vmatpush.bf16.msra.mxu0 0
      %1174 = vmatpush.bf16.msra.mxu0 0
      %1175 = vmatpush.bf16.msra.mxu0 0
      %1176 = vmatpush.bf16.msra.mxu0 0
      %1177 = vmatpush.bf16.msra.mxu0 0
      %1178 = vmatpush.bf16.msra.mxu0 0
      %1179 = vmatpush.bf16.msra.mxu0 0
      %1180 = vmatpush.bf16.msra.mxu0 %v1165
      %1181 = vmatmul.bf16.gmra.mxu0 %v1171
      %v1182 = vpop.f32.mrf.mxu0
      %v1183 = vadd.f32 %v1155, %v1182
      %v1184 = vpop.f32.mrf.mxu0
      %1185 = vdwg.mxu0
      %1186 = vmatpush.bf16.msra.mxu0 0
      %1187 = vmatpush.bf16.msra.mxu0 0
      %1188 = vmatpush.bf16.msra.mxu0 0
      %1189 = vmatpush.bf16.msra.mxu0 0
      %1190 = vmatpush.bf16.msra.mxu0 0
      %1191 = vmatpush.bf16.msra.mxu0 0
      %1192 = vmatpush.bf16.msra.mxu0 0
      %1193 = vmatpush.bf16.msra.mxu0 %v1166
      %1194 = vmatmul.bf16.gmra.mxu0 %v1171
      %v1195 = vpop.f32.mrf.mxu0
      %v1196 = vadd.f32 %v1156, %v1195
      %v1197 = vpop.f32.mrf.mxu0
      %1198 = vdwg.mxu0
      %v1199 = vmax.f32 %v1183, 0.0
      %v1200 = vmax.f32 %v1196, 0.0
      %v1201 = vpack.c.bf16 %v1199, %v1199
      %v1202 = vpack.c.bf16 %v1200, %v1200
      %v1203 = vld [vmem:[%s4] sm:$0xf]
      %v1204 = vld [vmem:[%s4 + $0x4] sm:$0xf]
      %v1205 = vld [vmem:[%s4 + $0x8] sm:$0xf]
      %v1206 = vld [vmem:[%s4 + $0xc] sm:$0xf]
      %v1207 = vld [vmem:[%s4 + $0x10] sm:$0xf]
      %v1208 = vld [vmem:[%s4 + $0x14] sm:$0xf]
      %v1209 = vld [vmem:[%s4 + $0x18] sm:$0xf]
      %v1210 = vld [vmem:[%s4 + $0x1c] sm:$0xf]
      %v1211 = vld [vmem:[%s4 + $0x20] sm:$0xf]
      %v1212 = vld [vmem:[%s4 + $0x24] sm:$0xf]
      %v1213 = vld [vmem:[%s4 + $0x28] sm:$0xf]
      %v1214 = vld [vmem:[%s4 + $0x2c] sm:$0xf]
      %v1215 = vld [vmem:[%s4 + $0x30] sm:$0xf]
      %v1216 = vld [vmem:[%s4 + $0x34] sm:$0xf]
      %v1217 = vld [vmem:[%s4 + $0x38] sm:$0xf]
      %v1218 = vld [vmem:[%s4 + $0x3c] sm:$0xf]
      %v1219 = vld [vmem:[%s8] sm:$0x1]
      %v1221 = vperm.slane %v1219, 0
      %v1239 = vunpack.c.l.b16 %v1203
      %v1240 = vunpack.c.l.b16 %v1204
      %v1241 = vunpack.c.l.b16 %v1205
      %v1242 = vunpack.c.l.b16 %v1206
      %v1243 = vunpack.c.l.b16 %v1207
      %v1244 = vunpack.c.l.b16 %v1208
      %v1245 = vunpack.c.l.b16 %v1209
      %v1246 = vunpack.c.l.b16 %v1210
      %v1247 = vunpack.c.l.b16 %v1211
      %v1248 = vunpack.c.l.b16 %v1212
      %v1249 = vunpack.c.l.b16 %v1213
      %v1250 = vunpack.c.l.b16 %v1214
      %v1251 = vunpack.c.l.b16 %v1215
      %v1252 = vunpack.c.l.b16 %v1216
      %v1253 = vunpack.c.l.b16 %v1217
      %v1254 = vunpack.c.l.b16 %v1218
      %v1255 = vpack.c.b16 %v1240, %v1239
      %v1256 = vpack.c.b16 %v1242, %v1241
      %v1257 = vpack.c.b16 %v1244, %v1243
      %v1258 = vpack.c.b16 %v1246, %v1245
      %v1259 = vpack.c.b16 %v1248, %v1247
      %v1260 = vpack.c.b16 %v1250, %v1249
      %v1261 = vpack.c.b16 %v1252, %v1251
      %v1262 = vpack.c.b16 %v1254, %v1253
      %1271 = vmatpush.bf16.msra.mxu0 %v1262
      %1272 = vmatpush.bf16.msra.mxu0 %v1261
      %1273 = vmatpush.bf16.msra.mxu0 %v1260
      %1274 = vmatpush.bf16.msra.mxu0 %v1259
      %1275 = vmatpush.bf16.msra.mxu0 %v1258
      %1276 = vmatpush.bf16.msra.mxu0 %v1257
      %1277 = vmatpush.bf16.msra.mxu0 %v1256
      %1278 = vmatpush.bf16.msra.mxu0 %v1255
      %1279 = vmatmul.bf16.gmra.mxu0 %v1201
      %v1280 = vpop.f32.mrf.mxu0
      %v1281 = vadd.f32 %v1221, %v1280
      %v1282 = vpop.f32.mrf.mxu0
      %1283 = vdwg.mxu0
      %v1284 = vsub.f32 0.0, %v1281
      %v1285 = vmul.f32 %v1284, 1.442695
      %v1286 = vpow.pop %v1285
      %v1287 = vadd.f32 %v1286, 1.0
      %v1288 = vrcp.pop %v1287
      %v1289 = vmul.f32 %v1287, %v1288
      %v1290 = vsub.f32 1.0, %v1289
      %v1291 = vmul.f32 %v1288, %v1290
      %v1292 = vadd.f32 %v1288, %v1291
      %vm1293 = vweird.f32 %v1287
      %vm1294 = vweird.f32 %v1288
      %vm1295 = vmor %vm1293, %vm1294
      %v1296 = vsel %vm1295, %v1288, %v1292
      %v1297 = vand.u32 2147483647, %v1287
      %vm1298 = vcmp.eq.f32.partialorder %v1297, 8.507059e+37
      %v1299 = vand.u32 %v1287, 2147483648
      %v1300 = vor.u32 1.1754944e-38, %v1299
      %v1301 = vsel %vm1298, %v1300, %v1296
      %v1302 = vmul.f32 1.0, %v1301
      %vm1303 = vcmask 781312
      %1304 = vst.msk [vmem:[%s330] sm:$0xf] %vm1303, %v1302
      %1305 = vmatpush.bf16.msra.mxu0 %v1262
      %1306 = vmatpush.bf16.msra.mxu0 %v1261
      %1307 = vmatpush.bf16.msra.mxu0 %v1260
      %1308 = vmatpush.bf16.msra.mxu0 %v1259
      %1309 = vmatpush.bf16.msra.mxu0 %v1258
      %1310 = vmatpush.bf16.msra.mxu0 %v1257
      %1311 = vmatpush.bf16.msra.mxu0 %v1256
      %1312 = vmatpush.bf16.msra.mxu0 %v1255
      %1313 = vmatmul.bf16.gmra.mxu0 %v1202
      %v1314 = vpop.f32.mrf.mxu0
      %v1315 = vadd.f32 %v1221, %v1314
      %v1316 = vpop.f32.mrf.mxu0
      %1317 = vdwg.mxu0
      %v1318 = vsub.f32 0.0, %v1315
      %v1319 = vmul.f32 %v1318, 1.442695
      %v1320 = vpow.pop %v1319
      %v1321 = vadd.f32 %v1320, 1.0
      %v1322 = vrcp.pop %v1321
      %v1323 = vmul.f32 %v1321, %v1322
      %v1324 = vsub.f32 1.0, %v1323
      %v1325 = vmul.f32 %v1322, %v1324
      %v1326 = vadd.f32 %v1322, %v1325
      %vm1327 = vweird.f32 %v1321
      %vm1328 = vweird.f32 %v1322
      %vm1329 = vmor %vm1327, %vm1328
      %v1330 = vsel %vm1329, %v1322, %v1326
      %v1331 = vand.u32 2147483647, %v1321
      %vm1332 = vcmp.eq.f32.partialorder %v1331, 8.507059e+37
      %v1333 = vand.u32 %v1321, 2147483648
      %v1334 = vor.u32 1.1754944e-38, %v1333
      %v1335 = vsel %vm1332, %v1334, %v1330
      %v1336 = vmul.f32 1.0, %v1335
      %1337 = vst.msk [vmem:[%s330 + $0x4] sm:$0xf] %vm1303, %v1336
      %p1338 = scmp.lt.s32.totalorder %s20, 1
      %s1339 = scalar_select %p1338, %s20, 1
      %s1340 = smul.addr %s1339, 8
      %s1341 = scalar_lea.vmem %s9, %s1340
      // Predicated region
      $region57: #{conv_autoencoder_forward.1} parent=55 // pred_check
        %p1342 = pneg %p232
      $region58: #{conv_autoencoder_forward.1} parent=55 // pred_check_branch
        %1344 = sbr.rel (%p1342) target = $region60
      $region59: #{conv_autoencoder_forward.1} parent=55 // pred_region
        _
      $region60: #{conv_autoencoder_forward.1} parent=55 // pred_fallthru
        _
    $region56: #{conv_autoencoder_forward.1} parent=5 // pred_fallthru
      _
    %p1345 = scmp.le.s32.totalorder 2, %s15
    // Predicated region
    $region61: #{conv_autoencoder_forward.1} parent=5 // pred_check
      %p1346 = pneg %p1345
    $region62: #{conv_autoencoder_forward.1} parent=5 // pred_check_branch
      %1348 = sbr.rel (%p1346) target = $region64
    $region63: #{conv_autoencoder_forward.1} parent=5 // pred_region
      %s1349 = ssub.s32 %s15, 2
      // Predicated region
      $region65: #{conv_autoencoder_forward.1} parent=63 // pred_check
        %p1350 = pneg %p238
      $region66: #{conv_autoencoder_forward.1} parent=63 // pred_check_branch
        %1352 = sbr.rel (%p1350) target = $region68
      $region67: #{conv_autoencoder_forward.1} parent=63 // pred_region
        %p1353 = scmp.lt.s32.totalorder %s21, 1
        %s1354 = scalar_select %p1353, %s21, 1
        %s1355 = smul.addr %s1354, 8
        %s1356 = scalar_lea.vmem %s9, %s1355
      $region68: #{conv_autoencoder_forward.1} parent=63 // pred_fallthru
        _
    $region64: #{conv_autoencoder_forward.1} parent=5 // pred_fallthru
      _
  $region6: #{conv_autoencoder_forward.1} parent=0 // loop_footer
    %s19 = sadd.s32 1, %s15
  $region7: #{conv_autoencoder_forward.1} parent=0 // loop_footer_branch
    %14 = sbr.rel target = $region3
  $region8: #{conv_autoencoder_forward.1} parent=0 // loop_exit
    _

</llo_original>
